<compile_context>
chip_gen: v7x
topology: tpu7x:2x2x1
jax: 0.10.0
libtpu: 0.0.40
codegen_flags: <defaults>
</compile_context>

<pallas_src>
import functools

import jax
import jax.numpy as jnp
from jax.experimental import pallas as pl
from jax.experimental.pallas import tpu as pltpu


def _round_up(x, m):
    return (x + m - 1) // m * m


def _cdiv(a, b):
    return -(-a // b)


# ----------------------------- Pallas kernel ------------------------------- #

def _ssd_level_kernel(x_ref, w3_ref, sh_ref, w1_ref, b1_ref, o_ref, *,
                      w_pad, rows_out):
    """One image row-band: fused (cls||reg) conv3x3 + BN + ReLU + conv1x1.

    x_ref : (1, (TH+2)*w_pad, Kc)  bf16  column-expanded, H-haloed band
    w3_ref: (3, Kc, 2*Cp)          bf16  3x3 weights (BN folded), one slab per kernel row
    sh_ref: (1, 2*Cp)              f32   folded conv bias + BN shift (cls || reg)
    w1_ref: (2*Cp, Coutp)          bf16  block-diagonal 1x1 weights (cls || reg)
    b1_ref: (1, Coutp)             f32
    o_ref : (1, rows_out, Coutp)   f32   single lane-dense output slab
    """
    # 3x3 conv = 3 accumulating GEMMs over statically shifted (aligned) row slices.
    t0 = x_ref[0, 0:rows_out, :]
    t1 = x_ref[0, w_pad:w_pad + rows_out, :]
    t2 = x_ref[0, 2 * w_pad:2 * w_pad + rows_out, :]
    acc = jnp.dot(t0, w3_ref[0], preferred_element_type=jnp.float32)
    acc = acc + jnp.dot(t1, w3_ref[1], preferred_element_type=jnp.float32)
    acc = acc + jnp.dot(t2, w3_ref[2], preferred_element_type=jnp.float32)

    # folded bias/BN shift + ReLU, then the block-diagonal fused 1x1 conv.
    y = jnp.maximum(acc + sh_ref[...], 0.0).astype(jnp.bfloat16)
    out = jnp.dot(y, w1_ref[...], preferred_element_type=jnp.float32) + b1_ref[...]
    o_ref[0] = out.astype(o_ref.dtype)


# ----------------------------- host-side helpers ---------------------------- #

def _expand_cols_and_band(x_bf16, w_pad, kc, th, num_bands):
    """(N,H,W,C) bf16 -> (N*num_bands, (th+2)*w_pad, kc) column-expanded row bands.

    Column expansion: channel dim becomes [x[.,w-1], x[.,w], x[.,w+1]] (3C), so a
    3x3/pad=1 conv is 3 GEMMs over H-shifted rows.  H halo (+1 row each side) and
    band padding are baked into the flattened layout; W/channel zero-padding keeps
    every slice 16-sublane / 128-lane aligned.
    """
    N, H, W, C = x_bf16.shape
    xw = jnp.pad(x_bf16, ((0, 0), (0, 0), (1, 1), (0, 0)))                      # W halo
    xc = jnp.concatenate([xw[:, :, kj:kj + W, :] for kj in range(3)], axis=-1)  # (N,H,W,3C)
    xc = jnp.pad(xc, ((0, 0), (1, num_bands * th - H + 1),                      # H halo + band pad
                      (0, w_pad - W), (0, kc - 3 * C)))
    bands = jnp.stack([xc[:, b * th:b * th + th + 2] for b in range(num_bands)], axis=1)
    return bands.reshape(N * num_bands, (th + 2) * w_pad, kc)


def _fold_fused_params(cls_p, reg_p, kc, cp, ccls, creg, coutp):
    """Fold eval-BN into the 3x3 conv and fuse cls||reg into one padded weight set."""
    w3c, b3c, sc, shc, w1c, b1c = cls_p
    w3r, b3r, sr, shr, w1r, b1r = reg_p
    C = w3c.shape[2]

    w3 = jnp.zeros((3, kc, 2 * cp), jnp.float32)
    w3 = w3.at[:, :3 * C, :C].set((w3c * sc).reshape(3, 3 * C, C))
    w3 = w3.at[:, :3 * C, cp:cp + C].set((w3r * sr).reshape(3, 3 * C, C))

    sh = jnp.zeros((1, 2 * cp), jnp.float32)
    sh = sh.at[0, :C].set(b3c * sc + shc).at[0, cp:cp + C].set(b3r * sr + shr)

    w1 = jnp.zeros((2 * cp, coutp), jnp.float32)
    w1 = w1.at[:C, :ccls].set(w1c).at[cp:cp + C, ccls:ccls + creg].set(w1r)

    b1 = jnp.zeros((1, coutp), jnp.float32)
    b1 = b1.at[0, :ccls].set(b1c).at[0, ccls:ccls + creg].set(b1r)

    return w3.astype(jnp.bfloat16), sh, w1.astype(jnp.bfloat16), b1


def _const_spec(shape):
    return pl.BlockSpec(shape, lambda g: tuple(0 for _ in shape))


def run_ssd_level(x_nhwc, cls_p, reg_p, *, nc=20, na=9, band_bytes=4 << 20):
    """One feature level: fused cls+reg head. Returns ((N,HW*na,nc), (N,HW*na,4))."""
    N, H, W, C = x_nhwc.shape
    Cp = _round_up(C, 128)
    Kc = _round_up(3 * C, 128)
    W_pad = _round_up(W, 16)
    Ccls, Creg = na * nc, na * 4
    Coutp = _round_up(Ccls + Creg, 128)

    # Row-band size: whole image when it fits the VMEM budget; split so there are
    # >= 2 grid steps overall (keeps both v7x TensorCores busy).
    TH = H
    while TH > 1 and (TH + 2) * W_pad * Kc * 2 > band_bytes:
        TH = _cdiv(TH, 2)
    if N * _cdiv(H, TH) < 2 and H >= 2:
        TH = _cdiv(H, 2)
    num_bands = _cdiv(H, TH)
    G = N * num_bands
    rows_in = (TH + 2) * W_pad
    rows_out = TH * W_pad

    bands = _expand_cols_and_band(x_nhwc.astype(jnp.bfloat16), W_pad, Kc, TH, num_bands)
    w3, sh, w1, b1 = _fold_fused_params(cls_p, reg_p, Kc, Cp, Ccls, Creg, Coutp)

    # Generous double-buffered footprint estimate, capped below physical VMEM.
    need = (2 * rows_in * Kc * 2                              # input band x2
            + 2 * rows_out * Coutp * 4                        # output band x2
            + 2 * (3 * Kc * 2 * Cp * 2 + 2 * Cp * 4           # weights/bias x2
                   + 2 * Cp * Coutp * 2 + Coutp * 4)
            + rows_out * 2 * Cp * 6 + rows_out * Coutp * 4    # acc / relu / epilogue temps
            + (8 << 20))                                      # compiler scratch margin
    try:
        vmem_cap = int(pltpu.get_tpu_info().vmem_capacity_bytes)
    except Exception:
        vmem_cap = 64 << 20
    vmem_limit = int(min(max(need, 32 << 20), 0.75 * vmem_cap))

    kernel = functools.partial(_ssd_level_kernel, w_pad=W_pad, rows_out=rows_out)
    out = pl.pallas_call(
        kernel,
        out_shape=jax.ShapeDtypeStruct((G, rows_out, Coutp), jnp.float32),
        grid=(G,),
        in_specs=[
            pl.BlockSpec((1, rows_in, Kc), lambda g: (g, 0, 0)),   # per-band patches
            _const_spec((3, Kc, 2 * Cp)),                          # fused 3x3 (+BN) weights
            _const_spec((1, 2 * Cp)),                              # folded shift
            _const_spec((2 * Cp, Coutp)),                          # block-diag 1x1 weights
            _const_spec((1, Coutp)),                               # 1x1 bias
        ],
        out_specs=pl.BlockSpec((1, rows_out, Coutp), lambda g: (g, 0, 0)),
        compiler_params=pltpu.CompilerParams(
            dimension_semantics=("parallel",),
            vmem_limit_bytes=vmem_limit),
    )(bands, w3, sh, w1, b1)

    # Strip band/W/channel padding BEFORE the PyTorch-order reshape.
    out = out.reshape(N, num_bands * TH, W_pad, Coutp)[:, :H, :W, :]
    fc = out[..., :Ccls].reshape(N, H * W * na, nc)
    fr = out[..., Ccls:Ccls + Creg].reshape(N, H * W * na, 4)
    return fc, fr


# ----------------------------- SSDHead wrapper ------------------------------ #

def init_ssd_head_params(key, c1, nc=20, na=9, bn_eps=1e-5):
    """Deterministic params mirroring SSDHead.__init__ shapes (BN pre-folded to scale/shift)."""
    params = []
    for c in c1:
        level = {}
        for name, cout in (("cls", na * nc), ("reg", na * 4)):
            key, *ks = jax.random.split(key, 9)
            w3 = 0.1 * jax.random.normal(ks[0], (3, 3, c, c), jnp.float32)
            b3 = 0.1 * jax.random.normal(ks[1], (c,), jnp.float32)
            gamma = 1.0 + 0.1 * jax.random.normal(ks[2], (c,), jnp.float32)
            beta = 0.1 * jax.random.normal(ks[3], (c,), jnp.float32)
            run_mean = 0.1 * jax.random.normal(ks[4], (c,), jnp.float32)
            run_var = jax.random.uniform(ks[5], (c,), jnp.float32, 0.5, 1.5)
            w1 = 0.1 * jax.random.normal(ks[6], (c, cout), jnp.float32)
            b1 = 0.1 * jax.random.normal(ks[7], (cout,), jnp.float32)
            scale = gamma / jnp.sqrt(run_var + bn_eps)      # eval-mode BN fold
            shift = beta - run_mean * scale
            level[name] = (w3, b3, scale, shift, w1, b1)
        params.append(level)
    return params


def ssd_head_forward(xs_nchw, params, nc=20, na=9):
    """xs_nchw: list of NCHW feature maps. Returns (cls, reg) like the PyTorch module."""
    cls_outs, reg_outs = [], []
    for x, p in zip(xs_nchw, params):
        x_nhwc = jnp.transpose(x, (0, 2, 3, 1)).astype(jnp.float32)
        fc, fr = run_ssd_level(x_nhwc, p["cls"], p["reg"], nc=nc, na=na)
        cls_outs.append(fc)
        reg_outs.append(fr)
    return jnp.concatenate(cls_outs, axis=1), jnp.concatenate(reg_outs, axis=1)


# ----------------------------- plain-JAX reference -------------------------- #
# Mirrors the kernel's precision policy (bf16 matmul inputs, f32 accumulation);
# identical to the PyTorch eval-mode module up to that bf16 input rounding.

def _branch_ref(x_nhwc, w3, b3, scale, shift, w1, b1):
    N, H, W, C = x_nhwc.shape
    xpad = jnp.pad(x_nhwc, ((0, 0), (1, 1), (1, 1), (0, 0))).astype(jnp.bfloat16)
    w3f = (w3 * scale).astype(jnp.bfloat16)
    shf = b3 * scale + shift
    acc = jnp.zeros((N, H, W, C), jnp.float32)
    for ki in range(3):
        for kj in range(3):
            acc = acc + jnp.einsum("nhwc,cd->nhwd",
                                   xpad[:, ki:ki + H, kj:kj + W, :], w3f[ki, kj],
                                   preferred_element_type=jnp.float32)
    y = jnp.maximum(acc + shf, 0.0).astype(jnp.bfloat16)
    out = jnp.einsum("nhwc,cd->nhwd", y, w1.astype(jnp.bfloat16),
                     preferred_element_type=jnp.float32) + b1
    return out.reshape(N, H * W, -1)


def ssd_head_forward_ref(xs_nchw, params, nc=20, na=9):
    cls_outs, reg_outs = [], []
    for x, p in zip(xs_nchw, params):
        x_nhwc = jnp.transpose(x, (0, 2, 3, 1)).astype(jnp.float32)
        n = x.shape[0]
        cls_outs.append(_branch_ref(x_nhwc, *p["cls"]).reshape(n, -1, nc))
        reg_outs.append(_branch_ref(x_nhwc, *p["reg"]).reshape(n, -1, 4))
    return jnp.concatenate(cls_outs, axis=1), jnp.concatenate(reg_outs, axis=1)


# ----------------------------------- main ----------------------------------- #

if __name__ == "__main__":
    nc, na = 20, 9
    c1 = [8, 16]                 # per-level channels
    spatials = [8, 4]            # per-level spatial sizes
    batch = 2

    key = jax.random.PRNGKey(0)
    key, k0, k1 = jax.random.split(key, 3)
    xs = [
        jax.random.normal(k0, (batch, c1[0], spatials[0], spatials[0]), jnp.float32),
        jax.random.normal(k1, (batch, c1[1], spatials[1], spatials[1]), jnp.float32),
    ]
    params = init_ssd_head_params(key, c1, nc=nc, na=na)

    cls_out, reg_out = ssd_head_forward(xs, params, nc=nc, na=na)
    jax.block_until_ready((cls_out, reg_out))

    # shape check: total anchors = sum(H*W*na) per level
    total_anchors = sum(s * s * na for s in spatials)
    assert cls_out.shape == (batch, total_anchors, nc), cls_out.shape
    assert reg_out.shape == (batch, total_anchors, 4), reg_out.shape

    # numerical check against the plain-JAX reference (same bf16 MXU input policy)
    cls_ref, reg_ref = ssd_head_forward_ref(xs, params, nc=nc, na=na)
    assert jnp.allclose(cls_out, cls_ref, atol=2e-2, rtol=2e-2), \
        float(jnp.max(jnp.abs(cls_out - cls_ref)))
    assert jnp.allclose(reg_out, reg_ref, atol=2e-2, rtol=2e-2), \
        float(jnp.max(jnp.abs(reg_out - reg_ref)))

    print("KERNEL_OK")
</pallas_src>

<mosaic_0001>
module attributes {stable_mosaic.version = 11 : i64} {
  func.func @_ssd_level_kernel(%arg0: i32, %arg1: memref<1x160x128xbf16, #tpu.memory_space<vmem>>, %arg2: memref<3x128x256xbf16, #tpu.memory_space<vmem>>, %arg3: memref<1x256xf32, #tpu.memory_space<vmem>>, %arg4: memref<256x256xbf16, #tpu.memory_space<vmem>>, %arg5: memref<1x256xf32, #tpu.memory_space<vmem>>, %arg6: memref<1x128x256xf32, #tpu.memory_space<vmem>>) attributes {dimension_semantics = [#tpu.dimension_semantics<parallel>], iteration_bounds = array<i64: 2>, scalar_prefetch = 0 : i64, scratch_operands = 0 : i64, tpu.core_type = #tpu.core_type<tc>, window_params = [{transform_indices = @transform_0, window_bounds = array<i64: 1, 160, 128>}, {pipeline_mode = #tpu.pipeline_mode<synchronous>, transform_indices = @transform_1, window_bounds = array<i64: 3, 128, 256>}, {pipeline_mode = #tpu.pipeline_mode<synchronous>, transform_indices = @transform_2, window_bounds = array<i64: 1, 256>}, {pipeline_mode = #tpu.pipeline_mode<synchronous>, transform_indices = @transform_3, window_bounds = array<i64: 256, 256>}, {pipeline_mode = #tpu.pipeline_mode<synchronous>, transform_indices = @transform_4, window_bounds = array<i64: 1, 256>}, {transform_indices = @transform_5, window_bounds = array<i64: 1, 128, 256>}]} {
    %c0 = arith.constant 0 : index
    %c0_0 = arith.constant 0 : index
    %c0_1 = arith.constant 0 : index
    %0 = vector.load %arg1[%c0, %c0_0, %c0_1] : memref<1x160x128xbf16, #tpu.memory_space<vmem>>, vector<1x128x128xbf16>
    %1 = vector.shape_cast %0 : vector<1x128x128xbf16> to vector<128x128xbf16>
    %c0_2 = arith.constant 0 : index
    %c16 = arith.constant 16 : index
    %c0_3 = arith.constant 0 : index
    %2 = vector.load %arg1[%c0_2, %c16, %c0_3] : memref<1x160x128xbf16, #tpu.memory_space<vmem>>, vector<1x128x128xbf16>
    %3 = vector.shape_cast %2 : vector<1x128x128xbf16> to vector<128x128xbf16>
    %c0_4 = arith.constant 0 : index
    %c32 = arith.constant 32 : index
    %c0_5 = arith.constant 0 : index
    %4 = vector.load %arg1[%c0_4, %c32, %c0_5] : memref<1x160x128xbf16, #tpu.memory_space<vmem>>, vector<1x128x128xbf16>
    %5 = vector.shape_cast %4 : vector<1x128x128xbf16> to vector<128x128xbf16>
    %c0_6 = arith.constant 0 : index
    %c0_7 = arith.constant 0 : index
    %c0_8 = arith.constant 0 : index
    %6 = vector.load %arg2[%c0_6, %c0_7, %c0_8] : memref<3x128x256xbf16, #tpu.memory_space<vmem>>, vector<1x128x256xbf16>
    %7 = vector.shape_cast %6 : vector<1x128x256xbf16> to vector<128x256xbf16>
    %cst = arith.constant dense<0.000000e+00> : vector<128x256xf32>
    %8 = tpu.matmul %1, %7, %cst {dimension_numbers = #tpu.dot_dimension_numbers<[1], [0], [0], [1], [0, 0, 1, 1], [], []>} : vector<128x128xbf16>, vector<128x256xbf16>, vector<128x256xf32> -> vector<128x256xf32>
    %c1 = arith.constant 1 : index
    %c0_9 = arith.constant 0 : index
    %c0_10 = arith.constant 0 : index
    %9 = vector.load %arg2[%c1, %c0_9, %c0_10] : memref<3x128x256xbf16, #tpu.memory_space<vmem>>, vector<1x128x256xbf16>
    %10 = vector.shape_cast %9 : vector<1x128x256xbf16> to vector<128x256xbf16>
    %cst_11 = arith.constant dense<0.000000e+00> : vector<128x256xf32>
    %11 = tpu.matmul %3, %10, %cst_11 {dimension_numbers = #tpu.dot_dimension_numbers<[1], [0], [0], [1], [0, 0, 1, 1], [], []>} : vector<128x128xbf16>, vector<128x256xbf16>, vector<128x256xf32> -> vector<128x256xf32>
    %12 = arith.addf %8, %11 : vector<128x256xf32>
    %c2 = arith.constant 2 : index
    %c0_12 = arith.constant 0 : index
    %c0_13 = arith.constant 0 : index
    %13 = vector.load %arg2[%c2, %c0_12, %c0_13] : memref<3x128x256xbf16, #tpu.memory_space<vmem>>, vector<1x128x256xbf16>
    %14 = vector.shape_cast %13 : vector<1x128x256xbf16> to vector<128x256xbf16>
    %cst_14 = arith.constant dense<0.000000e+00> : vector<128x256xf32>
    %15 = tpu.matmul %5, %14, %cst_14 {dimension_numbers = #tpu.dot_dimension_numbers<[1], [0], [0], [1], [0, 0, 1, 1], [], []>} : vector<128x128xbf16>, vector<128x256xbf16>, vector<128x256xf32> -> vector<128x256xf32>
    %16 = arith.addf %12, %15 : vector<128x256xf32>
    %c0_15 = arith.constant 0 : index
    %c0_16 = arith.constant 0 : index
    %17 = vector.load %arg3[%c0_15, %c0_16] : memref<1x256xf32, #tpu.memory_space<vmem>>, vector<1x256xf32>
    %18 = vector.broadcast %17 : vector<1x256xf32> to vector<128x256xf32>
    %19 = arith.addf %16, %18 : vector<128x256xf32>
    %cst_17 = arith.constant 0.000000e+00 : f32
    %20 = vector.broadcast %cst_17 : f32 to vector<128x256xf32>
    %21 = arith.maximumf %19, %20 : vector<128x256xf32>
    %22 = arith.truncf %21 : vector<128x256xf32> to vector<128x256xbf16>
    %c0_18 = arith.constant 0 : index
    %c0_19 = arith.constant 0 : index
    %23 = vector.load %arg4[%c0_18, %c0_19] : memref<256x256xbf16, #tpu.memory_space<vmem>>, vector<256x256xbf16>
    %cst_20 = arith.constant dense<0.000000e+00> : vector<128x256xf32>
    %24 = tpu.matmul %22, %23, %cst_20 {dimension_numbers = #tpu.dot_dimension_numbers<[1], [0], [0], [1], [0, 0, 1, 1], [], []>} : vector<128x256xbf16>, vector<256x256xbf16>, vector<128x256xf32> -> vector<128x256xf32>
    %c0_21 = arith.constant 0 : index
    %c0_22 = arith.constant 0 : index
    %25 = vector.load %arg5[%c0_21, %c0_22] : memref<1x256xf32, #tpu.memory_space<vmem>>, vector<1x256xf32>
    %26 = vector.broadcast %25 : vector<1x256xf32> to vector<128x256xf32>
    %27 = arith.addf %24, %26 : vector<128x256xf32>
    %c0_23 = arith.constant 0 : index
    %c0_24 = arith.constant 0 : index
    %c0_25 = arith.constant 0 : index
    %28 = vector.load %arg6[%c0_23, %c0_24, %c0_25] : memref<1x128x256xf32, #tpu.memory_space<vmem>>, vector<1x128x256xf32>
    %29 = vector.shape_cast %28 : vector<1x128x256xf32> to vector<128x256xf32>
    %30 = vector.shape_cast %27 : vector<128x256xf32> to vector<1x128x256xf32>
    tpu.vector_store %arg6[%c0_23, %c0_24, %c0_25], %30 {strides = array<i32>} : memref<1x128x256xf32, #tpu.memory_space<vmem>>, vector<1x128x256xf32>,
    return
  }
  func.func @transform_0(%arg0: i32) -> (i32, i32, i32) {
    %c0_i32 = arith.constant 0 : i32
    %c0_i32_0 = arith.constant 0 : i32
    %c0_i32_1 = arith.constant 0 : i32
    return %arg0, %c0_i32, %c0_i32_0 : i32, i32, i32
  }
  func.func @transform_1(%arg0: i32) -> (i32, i32, i32) {
    %c0_i32 = arith.constant 0 : i32
    %c0_i32_0 = arith.constant 0 : i32
    %c0_i32_1 = arith.constant 0 : i32
    %c0_i32_2 = arith.constant 0 : i32
    return %c0_i32, %c0_i32_0, %c0_i32_1 : i32, i32, i32
  }
  func.func @transform_2(%arg0: i32) -> (i32, i32) {
    %c0_i32 = arith.constant 0 : i32
    %c0_i32_0 = arith.constant 0 : i32
    %c0_i32_1 = arith.constant 0 : i32
    return %c0_i32, %c0_i32_0 : i32, i32
  }
  func.func @transform_3(%arg0: i32) -> (i32, i32) {
    %c0_i32 = arith.constant 0 : i32
    %c0_i32_0 = arith.constant 0 : i32
    %c0_i32_1 = arith.constant 0 : i32
    return %c0_i32, %c0_i32_0 : i32, i32
  }
  func.func @transform_4(%arg0: i32) -> (i32, i32) {
    %c0_i32 = arith.constant 0 : i32
    %c0_i32_0 = arith.constant 0 : i32
    %c0_i32_1 = arith.constant 0 : i32
    return %c0_i32, %c0_i32_0 : i32, i32
  }
  func.func @transform_5(%arg0: i32) -> (i32, i32, i32) {
    %c0_i32 = arith.constant 0 : i32
    %c0_i32_0 = arith.constant 0 : i32
    %c0_i32_1 = arith.constant 0 : i32
    return %arg0, %c0_i32, %c0_i32_0 : i32, i32, i32
  }
}

</mosaic_0001>

<llo_original>
// kernel: tpu_custom_call.1
$region0: #{tpu_custom_call.1}
  #allocation0 [shape = 'u32[]', space=smem, size = 0x4, offset = 0x4, fixed_abs, tag = 'smem constant byte address 0x4 - core index']
  #allocation1 [shape = 'u32[144,128]{1,0:T(1,128)}', space=vmem, size = 0x12000, scoped, tag = 'internal scratch']
  %s0 = inlined_call_operand.hbm [shape: bf16[2,160,128], index: 0, kind: input, shape index: {}]
  %s1 = inlined_call_operand.hbm [shape: bf16[3,128,256], index: 1, kind: input, shape index: {}]
  %s2 = inlined_call_operand.vmem [shape: f32[1,256], index: 2, kind: input, shape index: {}]
  %s3 = inlined_call_operand.hbm [shape: bf16[256,256], index: 3, kind: input, shape index: {}]
  %s4 = inlined_call_operand.vmem [shape: f32[1,256], index: 4, kind: input, shape index: {}]
  %s5 = inlined_call_operand.hbm [shape: f32[2,128,256], index: 5, kind: output, shape index: {}]
  %s6 = sld [smem:[#allocation0]]
  $region65: #{tpu_custom_call.1} parent=0
    _
  %s8 = ssub.s32 1, %s6
  %s9 = scalar_select 0, %s8, %s6
  $region1: #{tpu_custom_call.1} parent=0
    #allocation2 [shape = 'u8[81920]{0}', space=vmem, size = 0x14000, scoped, tag = 'input window, operand 0']
    #allocation3 [shape = 's32[2]{0}', space=sflag, size = 0x8, scoped, tag = 'scoped memory for tpu_custom_call.1']
    #allocation4 [shape = 's32[2]{0}', space=sflag, size = 0x8, scoped, tag = 'scoped memory for tpu_custom_call.1']
    #allocation5 [shape = 'u8[196608]{0}', space=vmem, size = 0x30000, scoped, tag = 'input window, operand 1, single buffered']
    #allocation6 [shape = 's32[1]{0}', space=sflag, size = 0x4, scoped, tag = 'scoped memory for tpu_custom_call.1']
    #allocation7 [shape = 'u8[131072]{0}', space=vmem, size = 0x20000, scoped, tag = 'input window, operand 3, single buffered']
    #allocation8 [shape = 'u8[262144]{0}', space=vmem, size = 0x40000, scoped, tag = 'output window, operand 0']
    %10 = vsyncpa [#allocation3], 0
    %s11 = scalar_lea.sflag [#allocation3], 1
    %12 = vsyncpa %s11, 0
    %13 = vsyncpa [#allocation6], 0
    %14 = vsyncpa [#allocation4], 0
    %s15 = scalar_lea.sflag [#allocation4], 1
    %16 = vsyncpa %s15, 0
    loop: start=0, step=1, limit=4
    $region2: #{tpu_custom_call.1} parent=1 // loop_pre_header
      _
    $region3: #{tpu_custom_call.1} parent=1 // loop_header
      %s18 = sphi 0, %s22
      %p19 = scmp.ge.s32.totalorder %s18, 4
      %s28 = sphi 0, %s30
      %s31 = sphi 0, %s28
      %s32 = sphi 0, %s31
      %s48 = sphi 0, %s32
      %s52 = sphi 0, %s52
      %s54 = sphi 0, %s52
      %s55 = sphi 0, %s54
      %s69 = sphi 0, %s55
      %s73 = sphi 0, %s73
      %s75 = sphi 0, %s73
      %s76 = sphi 0, %s75
      %s90 = sphi 0, %s76
      %s94 = sphi 0, %s94
      %s96 = sphi 0, %s94
      %s97 = sphi 0, %s96
      %s111 = sphi 0, %s97
      %s115 = sphi 0, %s115
      %s117 = sphi 0, %s115
      %s118 = sphi 0, %s117
      %s132 = sphi 0, %s118
      %s138 = sphi 0, %s140
      %s141 = sphi 0, %s138
      %s142 = sphi 0, %s141
      %s158 = sphi 0, %s142
    $region4: #{tpu_custom_call.1} parent=1 // loop_header_branch
      %21 = sbr.rel (%p19) target = $region8
    $region5: #{tpu_custom_call.1} parent=1 // loop_body
      %s23 = ssub.s32 %s18, 1
      %s24 = ssub.s32 %s18, 2
      %s25 = sadd.s32 %s18, 1
      %s26 = ssub.s32 %s18, %s25
      %p27 = scmp.eq.s32.totalorder %s26, 0
      %s29 = sadd.s32 %s28, 1
      %s30 = scalar_select %p27, %s28, %s29
      %p33 = pneg %p27
      %p34 = scmp.eq.s32.totalorder %s18, 1
      %p35 = por %p33, %p34
      %p36 = scmp.ne.s32.totalorder %s28, %s31
      %p37 = scmp.eq.s32.totalorder %s18, 0
      %p38 = por %p36, %p37
      %p39 = scmp.ne.s32.totalorder %s28, %s31
      %p40 = scmp.eq.s32.totalorder %s23, 1
      %p41 = por %p39, %p40
      %p42 = scmp.ne.s32.totalorder %s31, %s32
      %p43 = scmp.eq.s32.totalorder %s23, 0
      %p44 = por %p42, %p43
      %p45 = scmp.ne.s32.totalorder %s31, %s32
      %p46 = scmp.eq.s32.totalorder %s24, 1
      %p47 = por %p45, %p46
      %p49 = scmp.ne.s32.totalorder %s32, %s48
      %p50 = scmp.eq.s32.totalorder %s24, 0
      %p51 = por %p49, %p50
      %s53 = sadd.s32 %s52, 1
      %p56 = scmp.eq.s32.totalorder %s18, 1
      %p57 = scmp.ne.s32.totalorder %s52, %s54
      %p58 = scmp.eq.s32.totalorder %s18, 0
      %p59 = por %p57, %p58
      %p60 = scmp.ne.s32.totalorder %s52, %s54
      %p61 = scmp.eq.s32.totalorder %s23, 1
      %p62 = por %p60, %p61
      %p63 = scmp.ne.s32.totalorder %s54, %s55
      %p64 = scmp.eq.s32.totalorder %s23, 0
      %p65 = por %p63, %p64
      %p66 = scmp.ne.s32.totalorder %s54, %s55
      %p67 = scmp.eq.s32.totalorder %s24, 1
      %p68 = por %p66, %p67
      %p70 = scmp.ne.s32.totalorder %s55, %s69
      %p71 = scmp.eq.s32.totalorder %s24, 0
      %p72 = por %p70, %p71
      %s74 = sadd.s32 %s73, 1
      %p77 = scmp.eq.s32.totalorder %s18, 1
      %p78 = scmp.ne.s32.totalorder %s73, %s75
      %p79 = scmp.eq.s32.totalorder %s18, 0
      %p80 = por %p78, %p79
      %p81 = scmp.ne.s32.totalorder %s73, %s75
      %p82 = scmp.eq.s32.totalorder %s23, 1
      %p83 = por %p81, %p82
      %p84 = scmp.ne.s32.totalorder %s75, %s76
      %p85 = scmp.eq.s32.totalorder %s23, 0
      %p86 = por %p84, %p85
      %p87 = scmp.ne.s32.totalorder %s75, %s76
      %p88 = scmp.eq.s32.totalorder %s24, 1
      %p89 = por %p87, %p88
      %p91 = scmp.ne.s32.totalorder %s76, %s90
      %p92 = scmp.eq.s32.totalorder %s24, 0
      %p93 = por %p91, %p92
      %s95 = sadd.s32 %s94, 1
      %p98 = scmp.eq.s32.totalorder %s18, 1
      %p99 = scmp.ne.s32.totalorder %s94, %s96
      %p100 = scmp.eq.s32.totalorder %s18, 0
      %p101 = por %p99, %p100
      %p102 = scmp.ne.s32.totalorder %s94, %s96
      %p103 = scmp.eq.s32.totalorder %s23, 1
      %p104 = por %p102, %p103
      %p105 = scmp.ne.s32.totalorder %s96, %s97
      %p106 = scmp.eq.s32.totalorder %s23, 0
      %p107 = por %p105, %p106
      %p108 = scmp.ne.s32.totalorder %s96, %s97
      %p109 = scmp.eq.s32.totalorder %s24, 1
      %p110 = por %p108, %p109
      %p112 = scmp.ne.s32.totalorder %s97, %s111
      %p113 = scmp.eq.s32.totalorder %s24, 0
      %p114 = por %p112, %p113
      %s116 = sadd.s32 %s115, 1
      %p119 = scmp.eq.s32.totalorder %s18, 1
      %p120 = scmp.ne.s32.totalorder %s115, %s117
      %p121 = scmp.eq.s32.totalorder %s18, 0
      %p122 = por %p120, %p121
      %p123 = scmp.ne.s32.totalorder %s115, %s117
      %p124 = scmp.eq.s32.totalorder %s23, 1
      %p125 = por %p123, %p124
      %p126 = scmp.ne.s32.totalorder %s117, %s118
      %p127 = scmp.eq.s32.totalorder %s23, 0
      %p128 = por %p126, %p127
      %p129 = scmp.ne.s32.totalorder %s117, %s118
      %p130 = scmp.eq.s32.totalorder %s24, 1
      %p131 = por %p129, %p130
      %p133 = scmp.ne.s32.totalorder %s118, %s132
      %p134 = scmp.eq.s32.totalorder %s24, 0
      %p135 = por %p133, %p134
      %s136 = ssub.s32 %s18, %s25
      %p137 = scmp.eq.s32.totalorder %s136, 0
      %s139 = sadd.s32 %s138, 1
      %s140 = scalar_select %p137, %s138, %s139
      %p143 = pneg %p137
      %p144 = scmp.eq.s32.totalorder %s18, 1
      %p145 = por %p143, %p144
      %p146 = scmp.ne.s32.totalorder %s138, %s141
      %p147 = scmp.eq.s32.totalorder %s18, 0
      %p148 = por %p146, %p147
      %p149 = scmp.ne.s32.totalorder %s138, %s141
      %p150 = scmp.eq.s32.totalorder %s23, 1
      %p151 = por %p149, %p150
      %p152 = scmp.ne.s32.totalorder %s141, %s142
      %p153 = scmp.eq.s32.totalorder %s23, 0
      %p154 = por %p152, %p153
      %p155 = scmp.ne.s32.totalorder %s141, %s142
      %p156 = scmp.eq.s32.totalorder %s24, 1
      %p157 = por %p155, %p156
      %p159 = scmp.ne.s32.totalorder %s142, %s158
      %p160 = scmp.eq.s32.totalorder %s24, 0
      %p161 = por %p159, %p160
      %p162 = scmp.le.s32.totalorder 1, %s18
      %p163 = scmp.lt.s32.totalorder %s18, 3
      %p164 = pnand %p162, %p163
      %p165 = pneg %p164
      // Predicated region
      $region9: #{tpu_custom_call.1} parent=5 // pred_check
        _
      $region10: #{tpu_custom_call.1} parent=5 // pred_check_branch
        %167 = sbr.rel (%p164) target = $region12
      $region11: #{tpu_custom_call.1} parent=5 // pred_region
        %s168 = ssub.s32 %s18, 1
        // Predicated region
        $region13: #{tpu_custom_call.1} parent=11 // pred_check
          %p169 = pneg %p65
        $region14: #{tpu_custom_call.1} parent=11 // pred_check_branch
          %171 = sbr.rel (%p169) target = $region16
        $region15: #{tpu_custom_call.1} parent=11 // pred_region
          %s173 = ssub.s32 6144, 6144
          %174 = vsyncadd [#allocation6], %s173
          %s175 = sshll.u32 [#allocation5], 4
          %s176 = int_to_ptr.vmem [resolvable:$true] %s175
          %181 = dma.hbm_to_vmem [thread:$0]  %s1, 6144, %s176, [#allocation6], 128, 128, 8
        $region16: #{tpu_custom_call.1} parent=11 // pred_fallthru
          _
        // Predicated region
        $region17: #{tpu_custom_call.1} parent=11 // pred_check
          %p182 = pneg %p86
        $region18: #{tpu_custom_call.1} parent=11 // pred_check_branch
          %184 = sbr.rel (%p182) target = $region20
        $region19: #{tpu_custom_call.1} parent=11 // pred_region
          _
        $region20: #{tpu_custom_call.1} parent=11 // pred_fallthru
          _
        // Predicated region
        $region21: #{tpu_custom_call.1} parent=11 // pred_check
          %p185 = pneg %p107
        $region22: #{tpu_custom_call.1} parent=11 // pred_check_branch
          %187 = sbr.rel (%p185) target = $region24
        $region23: #{tpu_custom_call.1} parent=11 // pred_region
          %s189 = ssub.s32 4096, 4096
          %190 = vsyncadd [#allocation6], %s189
          %s191 = sshll.u32 [#allocation7], 4
          %s192 = int_to_ptr.vmem [resolvable:$true] %s191
          %197 = dma.hbm_to_vmem [thread:$0]  %s3, 4096, %s192, [#allocation6], 128, 128, 8
        $region24: #{tpu_custom_call.1} parent=11 // pred_fallthru
          _
        // Predicated region
        $region25: #{tpu_custom_call.1} parent=11 // pred_check
          %p198 = pneg %p128
        $region26: #{tpu_custom_call.1} parent=11 // pred_check_branch
          %200 = sbr.rel (%p198) target = $region28
        $region27: #{tpu_custom_call.1} parent=11 // pred_region
          _
        $region28: #{tpu_custom_call.1} parent=11 // pred_fallthru
          _
      $region12: #{tpu_custom_call.1} parent=5 // pred_fallthru
        _
      %p201 = scmp.lt.s32.totalorder %s18, 2
      // Predicated region
      $region29: #{tpu_custom_call.1} parent=5 // pred_check
        %p202 = pneg %p201
      $region30: #{tpu_custom_call.1} parent=5 // pred_check_branch
        %204 = sbr.rel (%p202) target = $region32
      $region31: #{tpu_custom_call.1} parent=5 // pred_region
        // Predicated region
        $region33: #{tpu_custom_call.1} parent=31 // pred_check
          %p205 = pneg %p38
        $region34: #{tpu_custom_call.1} parent=31 // pred_check_branch
          %207 = sbr.rel (%p205) target = $region36
        $region35: #{tpu_custom_call.1} parent=31 // pred_region
          %s208 = sand.u32 %s28, 1
          %s209 = scalar_lea.sflag [#allocation3], %s208
          %s210 = sand.u32 %s28, 1
          %s211 = smul.addr %s210, 80
          %s212 = scalar_lea.vmem [#allocation2], %s211
          %s214 = ssub.s32 1280, 1280
          %215 = vsyncadd %s209, %s214
          %s216 = smul.addr %s18, 20
          %s217 = smul.addr %s216, 64
          %s218 = scalar_lea.hbm %s0, %s217
          %s219 = sshll.u32 %s212, 4
          %s220 = int_to_ptr.vmem [resolvable:$true] %s219
          %225 = dma.hbm_to_vmem [thread:$0]  %s218, 1280, %s220, %s209, 64, 64, 4
        $region36: #{tpu_custom_call.1} parent=31 // pred_fallthru
          _
      $region32: #{tpu_custom_call.1} parent=5 // pred_fallthru
        _
      %p226 = scmp.le.s32.totalorder 1, %s18
      %p227 = scmp.lt.s32.totalorder %s18, 3
      %p228 = pnand %p226, %p227
      %p229 = pneg %p228
      // Predicated region
      $region37: #{tpu_custom_call.1} parent=5 // pred_check
        _
      $region38: #{tpu_custom_call.1} parent=5 // pred_check_branch
        %231 = sbr.rel (%p228) target = $region40
      $region39: #{tpu_custom_call.1} parent=5 // pred_region
        %s232 = ssub.s32 %s18, 1
        %s233 = sand.u32 %s31, 1
        %s234 = scalar_lea.sflag [#allocation3], %s233
        %s235 = sand.u32 %s31, 1
        %s236 = smul.addr %s235, 80
        %s237 = scalar_lea.vmem [#allocation2], %s236
        // Predicated region
        $region41: #{tpu_custom_call.1} parent=39 // pred_check
          %p238 = pneg %p44
        $region42: #{tpu_custom_call.1} parent=39 // pred_check_branch
          %240 = sbr.rel (%p238) target = $region44
        $region43: #{tpu_custom_call.1} parent=39 // pred_region
          %241 = dma.done %s234, 1280
        $region44: #{tpu_custom_call.1} parent=39 // pred_fallthru
          _
        // Predicated region
        $region45: #{tpu_custom_call.1} parent=39 // pred_check
          %p242 = pneg %p65
        $region46: #{tpu_custom_call.1} parent=39 // pred_check_branch
          %244 = sbr.rel (%p242) target = $region48
        $region47: #{tpu_custom_call.1} parent=39 // pred_region
          %245 = dma.done [#allocation6], 6144
        $region48: #{tpu_custom_call.1} parent=39 // pred_fallthru
          _
        // Predicated region
        $region49: #{tpu_custom_call.1} parent=39 // pred_check
          %p246 = pneg %p107
        $region50: #{tpu_custom_call.1} parent=39 // pred_check_branch
          %248 = sbr.rel (%p246) target = $region52
        $region51: #{tpu_custom_call.1} parent=39 // pred_region
          %249 = dma.done [#allocation6], 4096
        $region52: #{tpu_custom_call.1} parent=39 // pred_fallthru
          _
        %s250 = sand.u32 %s31, 1
        %s251 = scalar_lea.sflag [#allocation3], %s250
        %s252 = sand.u32 %s31, 1
        %s253 = smul.addr %s252, 80
        %s254 = scalar_lea.vmem [#allocation2], %s253
        %p255 = pneg %p44
        %p256 = pneg %p41
        %p257 = pneg %p65
        %p258 = pneg %p62
        %p259 = pneg %p86
        %p260 = pneg %p83
        %p261 = pneg %p107
        %p262 = pneg %p104
        %p263 = pneg %p128
        %p264 = pneg %p125
        %p265 = pneg %p154
        %p266 = pneg %p151
        %s267 = sand.u32 %s141, 1
        %s268 = scalar_lea.sflag [#allocation4], %s267
        %s269 = sand.u32 %s141, 1
        %s270 = smul.addr %s269, 256
        %s271 = scalar_lea.vmem [#allocation8], %s270
        %v273 = vld [vmem:[%s237] sm:$0xf]
        %v274 = vld [vmem:[%s237 + $0x4] sm:$0xf]
        %v275 = vld [vmem:[%s237 + $0x8] sm:$0xf]
        %v276 = vld [vmem:[%s237 + $0xc] sm:$0xf]
        %v277 = vld [vmem:[%s237 + $0x10] sm:$0xf]
        %v278 = vld [vmem:[%s237 + $0x14] sm:$0xf]
        %v279 = vld [vmem:[%s237 + $0x18] sm:$0xf]
        %v280 = vld [vmem:[%s237 + $0x1c] sm:$0xf]
        %v281 = vld [vmem:[%s237 + $0x20] sm:$0xf]
        %v282 = vld [vmem:[%s237 + $0x24] sm:$0xf]
        %v283 = vld [vmem:[%s237 + $0x28] sm:$0xf]
        %v284 = vld [vmem:[%s237 + $0x2c] sm:$0xf]
        %v285 = vld [vmem:[%s237 + $0x30] sm:$0xf]
        %v286 = vld [vmem:[%s237 + $0x34] sm:$0xf]
        %v287 = vld [vmem:[%s237 + $0x38] sm:$0xf]
        %v288 = vld [vmem:[%s237 + $0x3c] sm:$0xf]
        %v289 = vld [vmem:[%s237 + $0x40] sm:$0xf]
        %v290 = vld [vmem:[%s237 + $0x44] sm:$0xf]
        %v291 = vld [vmem:[%s237 + $0x10] sm:$0xf]
        %v292 = vld [vmem:[%s237 + $0x14] sm:$0xf]
        %v293 = vld [vmem:[%s237 + $0x18] sm:$0xf]
        %v294 = vld [vmem:[%s237 + $0x1c] sm:$0xf]
        %v295 = vld [vmem:[%s237 + $0x20] sm:$0xf]
        %v296 = vld [vmem:[%s237 + $0x24] sm:$0xf]
        %v297 = vld [vmem:[%s237 + $0x28] sm:$0xf]
        %v298 = vld [vmem:[%s237 + $0x2c] sm:$0xf]
        %v299 = vld [vmem:[%s237 + $0x30] sm:$0xf]
        %v300 = vld [vmem:[%s237 + $0x34] sm:$0xf]
        %v301 = vld [vmem:[%s237 + $0x38] sm:$0xf]
        %v302 = vld [vmem:[%s237 + $0x3c] sm:$0xf]
        %v303 = vld [vmem:[%s237 + $0x40] sm:$0xf]
        %v304 = vld [vmem:[%s237 + $0x44] sm:$0xf]
        %v305 = vld [vmem:[%s237 + $0x48] sm:$0xf]
        %v306 = vld [vmem:[%s237 + $0x4c] sm:$0xf]
        %v307 = vld [vmem:[#allocation5] sm:$0xff]
        %v308 = vld [vmem:[#allocation5 + $0x8] sm:$0xff]
        %v309 = vld [vmem:[#allocation5 + $0x10] sm:$0xff]
        %v310 = vld [vmem:[#allocation5 + $0x18] sm:$0xff]
        %v311 = vld [vmem:[#allocation5 + $0x20] sm:$0xff]
        %v312 = vld [vmem:[#allocation5 + $0x28] sm:$0xff]
        %v313 = vld [vmem:[#allocation5 + $0x30] sm:$0xff]
        %v314 = vld [vmem:[#allocation5 + $0x38] sm:$0xff]
        %v315 = vld [vmem:[#allocation5 + $0x40] sm:$0xff]
        %v316 = vld [vmem:[#allocation5 + $0x48] sm:$0xff]
        %v317 = vld [vmem:[#allocation5 + $0x50] sm:$0xff]
        %v318 = vld [vmem:[#allocation5 + $0x58] sm:$0xff]
        %v319 = vld [vmem:[#allocation5 + $0x60] sm:$0xff]
        %v320 = vld [vmem:[#allocation5 + $0x68] sm:$0xff]
        %v321 = vld [vmem:[#allocation5 + $0x70] sm:$0xff]
        %v322 = vld [vmem:[#allocation5 + $0x78] sm:$0xff]
        %s323 = scalar_lea.vmem [#allocation5], 128
        %v324 = vld [vmem:[%s323] sm:$0xff]
        %v325 = vld [vmem:[%s323 + $0x8] sm:$0xff]
        %v326 = vld [vmem:[%s323 + $0x10] sm:$0xff]
        %v327 = vld [vmem:[%s323 + $0x18] sm:$0xff]
        %v328 = vld [vmem:[%s323 + $0x20] sm:$0xff]
        %v329 = vld [vmem:[%s323 + $0x28] sm:$0xff]
        %v330 = vld [vmem:[%s323 + $0x30] sm:$0xff]
        %v331 = vld [vmem:[%s323 + $0x38] sm:$0xff]
        %v332 = vld [vmem:[%s323 + $0x40] sm:$0xff]
        %v333 = vld [vmem:[%s323 + $0x48] sm:$0xff]
        %v334 = vld [vmem:[%s323 + $0x50] sm:$0xff]
        %v335 = vld [vmem:[%s323 + $0x58] sm:$0xff]
        %v336 = vld [vmem:[%s323 + $0x60] sm:$0xff]
        %v337 = vld [vmem:[%s323 + $0x68] sm:$0xff]
        %v338 = vld [vmem:[%s323 + $0x70] sm:$0xff]
        %v339 = vld [vmem:[%s323 + $0x78] sm:$0xff]
        %v356 = vunpack.c.l.b16 %v275
        %v357 = vunpack.c.l.b16 %v276
        %v358 = vunpack.c.l.b16 %v277
        %v359 = vunpack.c.l.b16 %v278
        %v360 = vunpack.c.l.b16 %v279
        %v361 = vunpack.c.l.b16 %v280
        %v362 = vunpack.c.l.b16 %v281
        %v363 = vunpack.c.l.b16 %v282
        %v364 = vunpack.c.l.b16 %v283
        %v365 = vunpack.c.l.b16 %v284
        %v366 = vunpack.c.l.b16 %v285
        %v367 = vunpack.c.l.b16 %v286
        %v368 = vunpack.c.l.b16 %v287
        %v369 = vunpack.c.l.b16 %v288
        %v370 = vunpack.c.l.b16 %v289
        %v371 = vunpack.c.l.b16 %v290
        %v372 = vpack.c.b16 %v357, %v356
        %v373 = vpack.c.b16 %v359, %v358
        %v374 = vpack.c.b16 %v361, %v360
        %v375 = vpack.c.b16 %v363, %v362
        %v376 = vpack.c.b16 %v365, %v364
        %v377 = vpack.c.b16 %v367, %v366
        %v378 = vpack.c.b16 %v369, %v368
        %v379 = vpack.c.b16 %v371, %v370
        %v404 = vunpack.c.l.b16 %v324
        %v405 = vunpack.c.h.b16 %v324
        %v406 = vunpack.c.l.b16 %v325
        %v407 = vunpack.c.h.b16 %v325
        %v408 = vunpack.c.l.b16 %v326
        %v409 = vunpack.c.h.b16 %v326
        %v410 = vunpack.c.l.b16 %v327
        %v411 = vunpack.c.h.b16 %v327
        %v412 = vunpack.c.l.b16 %v328
        %v413 = vunpack.c.h.b16 %v328
        %v414 = vunpack.c.l.b16 %v329
        %v415 = vunpack.c.h.b16 %v329
        %v416 = vunpack.c.l.b16 %v330
        %v417 = vunpack.c.h.b16 %v330
        %v418 = vunpack.c.l.b16 %v331
        %v419 = vunpack.c.h.b16 %v331
        %v420 = vunpack.c.l.b16 %v332
        %v421 = vunpack.c.h.b16 %v332
        %v422 = vunpack.c.l.b16 %v333
        %v423 = vunpack.c.h.b16 %v333
        %v424 = vunpack.c.l.b16 %v334
        %v425 = vunpack.c.h.b16 %v334
        %v426 = vunpack.c.l.b16 %v335
        %v427 = vunpack.c.h.b16 %v335
        %v428 = vunpack.c.l.b16 %v336
        %v429 = vunpack.c.h.b16 %v336
        %v430 = vunpack.c.l.b16 %v337
        %v431 = vunpack.c.h.b16 %v337
        %v432 = vunpack.c.l.b16 %v338
        %v433 = vunpack.c.h.b16 %v338
        %v434 = vunpack.c.l.b16 %v339
        %v435 = vunpack.c.h.b16 %v339
        %v436 = vpack.c.b16 %v406, %v404
        %v437 = vpack.c.b16 %v407, %v405
        %v438 = vpack.c.b16 %v410, %v408
        %v439 = vpack.c.b16 %v411, %v409
        %v440 = vpack.c.b16 %v414, %v412
        %v441 = vpack.c.b16 %v415, %v413
        %v442 = vpack.c.b16 %v418, %v416
        %v443 = vpack.c.b16 %v419, %v417
        %v444 = vpack.c.b16 %v422, %v420
        %v445 = vpack.c.b16 %v423, %v421
        %v446 = vpack.c.b16 %v426, %v424
        %v447 = vpack.c.b16 %v427, %v425
        %v448 = vpack.c.b16 %v430, %v428
        %v449 = vpack.c.b16 %v431, %v429
        %v450 = vpack.c.b16 %v434, %v432
        %v451 = vpack.c.b16 %v435, %v433
        %468 = vmatprep.subr.bf16.mxu0 %v437
        %469 = vmatpush1.bf16.msra.mxu0 %v436
        %470 = vmatprep.subr.bf16.mxu0 %v439
        %471 = vmatpush1.bf16.msra.mxu0 %v438
        %472 = vmatprep.subr.bf16.mxu0 %v441
        %473 = vmatpush1.bf16.msra.mxu0 %v440
        %474 = vmatprep.subr.bf16.mxu0 %v443
        %475 = vmatpush1.bf16.msra.mxu0 %v442
        %476 = vmatprep.subr.bf16.mxu0 %v445
        %477 = vmatpush1.bf16.msra.mxu0 %v444
        %478 = vmatprep.subr.bf16.mxu0 %v447
        %479 = vmatpush1.bf16.msra.mxu0 %v446
        %480 = vmatprep.subr.bf16.mxu0 %v449
        %481 = vmatpush1.bf16.msra.mxu0 %v448
        %482 = vmatprep.subr.bf16.mxu0 %v451
        %483 = vmatpush1.bf16.msra.mxu0 %v450
        %484 = vmatprep.subr.bf16.mxu0 0
        %485 = vmatpush1.bf16.msra.mxu0 0
        %486 = vmatprep.subr.bf16.mxu0 0
        %487 = vmatpush1.bf16.msra.mxu0 0
        %488 = vmatprep.subr.bf16.mxu0 0
        %489 = vmatpush1.bf16.msra.mxu0 0
        %490 = vmatprep.subr.bf16.mxu0 0
        %491 = vmatpush1.bf16.msra.mxu0 0
        %492 = vmatprep.subr.bf16.mxu0 0
        %493 = vmatpush1.bf16.msra.mxu0 0
        %494 = vmatprep.subr.bf16.mxu0 0
        %495 = vmatpush1.bf16.msra.mxu0 0
        %496 = vmatprep.subr.bf16.mxu0 0
        %497 = vmatpush1.bf16.msra.mxu0 0
        %498 = vmatprep.subr.bf16.mxu0 0
        %499 = vmatpush1.bf16.msra.mxu0 0
        %500 = vmatprep.mubr.bf16.mxu0 0
        %501 = vmatmul.mubr.bf16.gmra.mrb[0].mxu0 %v372
        %v502 = vpop.f32.mrb[0].mxu0
        %v503 = vadd.f32 0.0, %v502
        %v504 = vpop.f32.mrb[0].mxu0
        %v505 = vadd.f32 0.0, %v504
        %v506 = vpop.f32.mrb[0].mxu0
        %v507 = vadd.f32 0.0, %v506
        %v508 = vpop.f32.mrb[0].mxu0
        %v509 = vadd.f32 0.0, %v508
        %510 = vmatprep.mubr.bf16.mxu0 0
        %511 = vmatmul.mubr.bf16.gmra.mrb[0].mxu0 %v373
        %v512 = vpop.f32.mrb[0].mxu0
        %v513 = vadd.f32 0.0, %v512
        %v514 = vpop.f32.mrb[0].mxu0
        %v515 = vadd.f32 0.0, %v514
        %v516 = vpop.f32.mrb[0].mxu0
        %v517 = vadd.f32 0.0, %v516
        %v518 = vpop.f32.mrb[0].mxu0
        %v519 = vadd.f32 0.0, %v518
        %520 = vmatprep.mubr.bf16.mxu0 0
        %521 = vmatmul.mubr.bf16.gmra.mrb[0].mxu0 %v374
        %v522 = vpop.f32.mrb[0].mxu0
        %v523 = vadd.f32 0.0, %v522
        %v524 = vpop.f32.mrb[0].mxu0
        %v525 = vadd.f32 0.0, %v524
        %v526 = vpop.f32.mrb[0].mxu0
        %v527 = vadd.f32 0.0, %v526
        %v528 = vpop.f32.mrb[0].mxu0
        %v529 = vadd.f32 0.0, %v528
        %530 = vmatprep.mubr.bf16.mxu0 0
        %531 = vmatmul.mubr.bf16.gmra.mrb[0].mxu0 %v375
        %v532 = vpop.f32.mrb[0].mxu0
        %v533 = vadd.f32 0.0, %v532
        %v534 = vpop.f32.mrb[0].mxu0
        %v535 = vadd.f32 0.0, %v534
        %v536 = vpop.f32.mrb[0].mxu0
        %v537 = vadd.f32 0.0, %v536
        %v538 = vpop.f32.mrb[0].mxu0
        %v539 = vadd.f32 0.0, %v538
        %540 = vmatprep.mubr.bf16.mxu0 0
        %541 = vmatmul.mubr.bf16.gmra.mrb[0].mxu0 %v376
        %v542 = vpop.f32.mrb[0].mxu0
        %v543 = vadd.f32 0.0, %v542
        %v544 = vpop.f32.mrb[0].mxu0
        %v545 = vadd.f32 0.0, %v544
        %v546 = vpop.f32.mrb[0].mxu0
        %v547 = vadd.f32 0.0, %v546
        %v548 = vpop.f32.mrb[0].mxu0
        %v549 = vadd.f32 0.0, %v548
        %550 = vmatprep.mubr.bf16.mxu0 0
        %551 = vmatmul.mubr.bf16.gmra.mrb[0].mxu0 %v377
        %v552 = vpop.f32.mrb[0].mxu0
        %v553 = vadd.f32 0.0, %v552
        %v554 = vpop.f32.mrb[0].mxu0
        %v555 = vadd.f32 0.0, %v554
        %v556 = vpop.f32.mrb[0].mxu0
        %v557 = vadd.f32 0.0, %v556
        %v558 = vpop.f32.mrb[0].mxu0
        %v559 = vadd.f32 0.0, %v558
        %560 = vmatprep.mubr.bf16.mxu0 0
        %561 = vmatmul.mubr.bf16.gmra.mrb[0].mxu0 %v378
        %v562 = vpop.f32.mrb[0].mxu0
        %v563 = vadd.f32 0.0, %v562
        %v564 = vpop.f32.mrb[0].mxu0
        %v565 = vadd.f32 0.0, %v564
        %v566 = vpop.f32.mrb[0].mxu0
        %v567 = vadd.f32 0.0, %v566
        %v568 = vpop.f32.mrb[0].mxu0
        %v569 = vadd.f32 0.0, %v568
        %570 = vmatprep.mubr.bf16.mxu0 0
        %571 = vmatmul.mubr.bf16.gmra.mrb[0].mxu0 %v379
        %v572 = vpop.f32.mrb[0].mxu0
        %v573 = vadd.f32 0.0, %v572
        %v574 = vpop.f32.mrb[0].mxu0
        %v575 = vadd.f32 0.0, %v574
        %v576 = vpop.f32.mrb[0].mxu0
        %v577 = vadd.f32 0.0, %v576
        %v578 = vpop.f32.mrb[0].mxu0
        %v579 = vadd.f32 0.0, %v578
        %580 = vdwg.mxu0
        %v583 = vunpack.c.l.b16 %v273
        %v584 = vunpack.c.l.b16 %v274
        %v585 = vpack.c.b16 %v584, %v583
        %v603 = vunpack.c.l.b16 %v307
        %v604 = vunpack.c.h.b16 %v307
        %v605 = vunpack.c.l.b16 %v308
        %v606 = vunpack.c.h.b16 %v308
        %v607 = vunpack.c.l.b16 %v309
        %v608 = vunpack.c.h.b16 %v309
        %v609 = vunpack.c.l.b16 %v310
        %v610 = vunpack.c.h.b16 %v310
        %v611 = vunpack.c.l.b16 %v311
        %v612 = vunpack.c.h.b16 %v311
        %v613 = vunpack.c.l.b16 %v312
        %v614 = vunpack.c.h.b16 %v312
        %v615 = vunpack.c.l.b16 %v313
        %v616 = vunpack.c.h.b16 %v313
        %v617 = vunpack.c.l.b16 %v314
        %v618 = vunpack.c.h.b16 %v314
        %v619 = vunpack.c.l.b16 %v315
        %v620 = vunpack.c.h.b16 %v315
        %v621 = vunpack.c.l.b16 %v316
        %v622 = vunpack.c.h.b16 %v316
        %v623 = vunpack.c.l.b16 %v317
        %v624 = vunpack.c.h.b16 %v317
        %v625 = vunpack.c.l.b16 %v318
        %v626 = vunpack.c.h.b16 %v318
        %v627 = vunpack.c.l.b16 %v319
        %v628 = vunpack.c.h.b16 %v319
        %v629 = vunpack.c.l.b16 %v320
        %v630 = vunpack.c.h.b16 %v320
        %v631 = vunpack.c.l.b16 %v321
        %v632 = vunpack.c.h.b16 %v321
        %v633 = vunpack.c.l.b16 %v322
        %v634 = vunpack.c.h.b16 %v322
        %v635 = vpack.c.b16 %v605, %v603
        %v636 = vpack.c.b16 %v606, %v604
        %v637 = vpack.c.b16 %v609, %v607
        %v638 = vpack.c.b16 %v610, %v608
        %v639 = vpack.c.b16 %v613, %v611
        %v640 = vpack.c.b16 %v614, %v612
        %v641 = vpack.c.b16 %v617, %v615
        %v642 = vpack.c.b16 %v618, %v616
        %v643 = vpack.c.b16 %v621, %v619
        %v644 = vpack.c.b16 %v622, %v620
        %v645 = vpack.c.b16 %v625, %v623
        %v646 = vpack.c.b16 %v626, %v624
        %v647 = vpack.c.b16 %v629, %v627
        %v648 = vpack.c.b16 %v630, %v628
        %v649 = vpack.c.b16 %v633, %v631
        %v650 = vpack.c.b16 %v634, %v632
        %667 = vmatprep.subr.bf16.mxu0 %v636
        %668 = vmatpush1.bf16.msra.mxu0 %v635
        %669 = vmatprep.subr.bf16.mxu0 %v638
        %670 = vmatpush1.bf16.msra.mxu0 %v637
        %671 = vmatprep.subr.bf16.mxu0 %v640
        %672 = vmatpush1.bf16.msra.mxu0 %v639
        %673 = vmatprep.subr.bf16.mxu0 %v642
        %674 = vmatpush1.bf16.msra.mxu0 %v641
        %675 = vmatprep.subr.bf16.mxu0 %v644
        %676 = vmatpush1.bf16.msra.mxu0 %v643
        %677 = vmatprep.subr.bf16.mxu0 %v646
        %678 = vmatpush1.bf16.msra.mxu0 %v645
        %679 = vmatprep.subr.bf16.mxu0 %v648
        %680 = vmatpush1.bf16.msra.mxu0 %v647
        %681 = vmatprep.subr.bf16.mxu0 %v650
        %682 = vmatpush1.bf16.msra.mxu0 %v649
        %683 = vmatprep.subr.bf16.mxu0 0
        %684 = vmatpush1.bf16.msra.mxu0 0
        %685 = vmatprep.subr.bf16.mxu0 0
        %686 = vmatpush1.bf16.msra.mxu0 0
        %687 = vmatprep.subr.bf16.mxu0 0
        %688 = vmatpush1.bf16.msra.mxu0 0
        %689 = vmatprep.subr.bf16.mxu0 0
        %690 = vmatpush1.bf16.msra.mxu0 0
        %691 = vmatprep.subr.bf16.mxu0 0
        %692 = vmatpush1.bf16.msra.mxu0 0
        %693 = vmatprep.subr.bf16.mxu0 0
        %694 = vmatpush1.bf16.msra.mxu0 0
        %695 = vmatprep.subr.bf16.mxu0 0
        %696 = vmatpush1.bf16.msra.mxu0 0
        %697 = vmatprep.subr.bf16.mxu0 0
        %698 = vmatpush1.bf16.msra.mxu0 0
        %699 = vmatprep.mubr.bf16.mxu0 0
        %700 = vmatmul.mubr.bf16.gmra.mrb[0].mxu0 %v585
        %v701 = vpop.f32.mrb[0].mxu0
        %v702 = vadd.f32 %v503, %v701
        %v703 = vpop.f32.mrb[0].mxu0
        %v704 = vadd.f32 %v505, %v703
        %v705 = vpop.f32.mrb[0].mxu0
        %v706 = vadd.f32 %v507, %v705
        %v707 = vpop.f32.mrb[0].mxu0
        %v708 = vadd.f32 %v509, %v707
        %709 = vmatprep.mubr.bf16.mxu0 0
        %710 = vmatmul.mubr.bf16.gmra.mrb[0].mxu0 %v372
        %v711 = vpop.f32.mrb[0].mxu0
        %v712 = vadd.f32 %v513, %v711
        %v713 = vpop.f32.mrb[0].mxu0
        %v714 = vadd.f32 %v515, %v713
        %v715 = vpop.f32.mrb[0].mxu0
        %v716 = vadd.f32 %v517, %v715
        %v717 = vpop.f32.mrb[0].mxu0
        %v718 = vadd.f32 %v519, %v717
        %719 = vmatprep.mubr.bf16.mxu0 0
        %720 = vmatmul.mubr.bf16.gmra.mrb[0].mxu0 %v373
        %v721 = vpop.f32.mrb[0].mxu0
        %v722 = vadd.f32 %v523, %v721
        %v723 = vpop.f32.mrb[0].mxu0
        %v724 = vadd.f32 %v525, %v723
        %v725 = vpop.f32.mrb[0].mxu0
        %v726 = vadd.f32 %v527, %v725
        %v727 = vpop.f32.mrb[0].mxu0
        %v728 = vadd.f32 %v529, %v727
        %729 = vmatprep.mubr.bf16.mxu0 0
        %730 = vmatmul.mubr.bf16.gmra.mrb[0].mxu0 %v374
        %v731 = vpop.f32.mrb[0].mxu0
        %v732 = vadd.f32 %v533, %v731
        %v733 = vpop.f32.mrb[0].mxu0
        %v734 = vadd.f32 %v535, %v733
        %v735 = vpop.f32.mrb[0].mxu0
        %v736 = vadd.f32 %v537, %v735
        %v737 = vpop.f32.mrb[0].mxu0
        %v738 = vadd.f32 %v539, %v737
        %739 = vmatprep.mubr.bf16.mxu0 0
        %740 = vmatmul.mubr.bf16.gmra.mrb[0].mxu0 %v375
        %v741 = vpop.f32.mrb[0].mxu0
        %v742 = vadd.f32 %v543, %v741
        %v743 = vpop.f32.mrb[0].mxu0
        %v744 = vadd.f32 %v545, %v743
        %v745 = vpop.f32.mrb[0].mxu0
        %v746 = vadd.f32 %v547, %v745
        %v747 = vpop.f32.mrb[0].mxu0
        %v748 = vadd.f32 %v549, %v747
        %749 = vmatprep.mubr.bf16.mxu0 0
        %750 = vmatmul.mubr.bf16.gmra.mrb[0].mxu0 %v376
        %v751 = vpop.f32.mrb[0].mxu0
        %v752 = vadd.f32 %v553, %v751
        %v753 = vpop.f32.mrb[0].mxu0
        %v754 = vadd.f32 %v555, %v753
        %v755 = vpop.f32.mrb[0].mxu0
        %v756 = vadd.f32 %v557, %v755
        %v757 = vpop.f32.mrb[0].mxu0
        %v758 = vadd.f32 %v559, %v757
        %759 = vmatprep.mubr.bf16.mxu0 0
        %760 = vmatmul.mubr.bf16.gmra.mrb[0].mxu0 %v377
        %v761 = vpop.f32.mrb[0].mxu0
        %v762 = vadd.f32 %v563, %v761
        %v763 = vpop.f32.mrb[0].mxu0
        %v764 = vadd.f32 %v565, %v763
        %v765 = vpop.f32.mrb[0].mxu0
        %v766 = vadd.f32 %v567, %v765
        %v767 = vpop.f32.mrb[0].mxu0
        %v768 = vadd.f32 %v569, %v767
        %769 = vmatprep.mubr.bf16.mxu0 0
        %770 = vmatmul.mubr.bf16.gmra.mrb[0].mxu0 %v378
        %v771 = vpop.f32.mrb[0].mxu0
        %v772 = vadd.f32 %v573, %v771
        %v773 = vpop.f32.mrb[0].mxu0
        %v774 = vadd.f32 %v575, %v773
        %v775 = vpop.f32.mrb[0].mxu0
        %v776 = vadd.f32 %v577, %v775
        %v777 = vpop.f32.mrb[0].mxu0
        %v778 = vadd.f32 %v579, %v777
        %779 = vdwg.mxu0
        %s780 = scalar_lea.vmem [#allocation5], 256
        %v781 = vld [vmem:[%s780] sm:$0xff]
        %v782 = vld [vmem:[%s780 + $0x8] sm:$0xff]
        %v783 = vld [vmem:[%s780 + $0x10] sm:$0xff]
        %v784 = vld [vmem:[%s780 + $0x18] sm:$0xff]
        %v785 = vld [vmem:[%s780 + $0x20] sm:$0xff]
        %v786 = vld [vmem:[%s780 + $0x28] sm:$0xff]
        %v787 = vld [vmem:[%s780 + $0x30] sm:$0xff]
        %v788 = vld [vmem:[%s780 + $0x38] sm:$0xff]
        %v789 = vld [vmem:[%s780 + $0x40] sm:$0xff]
        %v790 = vld [vmem:[%s780 + $0x48] sm:$0xff]
        %v791 = vld [vmem:[%s780 + $0x50] sm:$0xff]
        %v792 = vld [vmem:[%s780 + $0x58] sm:$0xff]
        %v793 = vld [vmem:[%s780 + $0x60] sm:$0xff]
        %v794 = vld [vmem:[%s780 + $0x68] sm:$0xff]
        %v795 = vld [vmem:[%s780 + $0x70] sm:$0xff]
        %v796 = vld [vmem:[%s780 + $0x78] sm:$0xff]
        %v813 = vunpack.c.l.b16 %v291
        %v814 = vunpack.c.l.b16 %v292
        %v815 = vunpack.c.l.b16 %v293
        %v816 = vunpack.c.l.b16 %v294
        %v817 = vunpack.c.l.b16 %v295
        %v818 = vunpack.c.l.b16 %v296
        %v819 = vunpack.c.l.b16 %v297
        %v820 = vunpack.c.l.b16 %v298
        %v821 = vunpack.c.l.b16 %v299
        %v822 = vunpack.c.l.b16 %v300
        %v823 = vunpack.c.l.b16 %v301
        %v824 = vunpack.c.l.b16 %v302
        %v825 = vunpack.c.l.b16 %v303
        %v826 = vunpack.c.l.b16 %v304
        %v827 = vunpack.c.l.b16 %v305
        %v828 = vunpack.c.l.b16 %v306
        %v829 = vpack.c.b16 %v814, %v813
        %v830 = vpack.c.b16 %v816, %v815
        %v831 = vpack.c.b16 %v818, %v817
        %v832 = vpack.c.b16 %v820, %v819
        %v833 = vpack.c.b16 %v822, %v821
        %v834 = vpack.c.b16 %v824, %v823
        %v835 = vpack.c.b16 %v826, %v825
        %v836 = vpack.c.b16 %v828, %v827
        %v861 = vunpack.c.l.b16 %v781
        %v862 = vunpack.c.h.b16 %v781
        %v863 = vunpack.c.l.b16 %v782
        %v864 = vunpack.c.h.b16 %v782
        %v865 = vunpack.c.l.b16 %v783
        %v866 = vunpack.c.h.b16 %v783
        %v867 = vunpack.c.l.b16 %v784
        %v868 = vunpack.c.h.b16 %v784
        %v869 = vunpack.c.l.b16 %v785
        %v870 = vunpack.c.h.b16 %v785
        %v871 = vunpack.c.l.b16 %v786
        %v872 = vunpack.c.h.b16 %v786
        %v873 = vunpack.c.l.b16 %v787
        %v874 = vunpack.c.h.b16 %v787
        %v875 = vunpack.c.l.b16 %v788
        %v876 = vunpack.c.h.b16 %v788
        %v877 = vunpack.c.l.b16 %v789
        %v878 = vunpack.c.h.b16 %v789
        %v879 = vunpack.c.l.b16 %v790
        %v880 = vunpack.c.h.b16 %v790
        %v881 = vunpack.c.l.b16 %v791
        %v882 = vunpack.c.h.b16 %v791
        %v883 = vunpack.c.l.b16 %v792
        %v884 = vunpack.c.h.b16 %v792
        %v885 = vunpack.c.l.b16 %v793
        %v886 = vunpack.c.h.b16 %v793
        %v887 = vunpack.c.l.b16 %v794
        %v888 = vunpack.c.h.b16 %v794
        %v889 = vunpack.c.l.b16 %v795
        %v890 = vunpack.c.h.b16 %v795
        %v891 = vunpack.c.l.b16 %v796
        %v892 = vunpack.c.h.b16 %v796
        %v893 = vpack.c.b16 %v863, %v861
        %v894 = vpack.c.b16 %v864, %v862
        %v895 = vpack.c.b16 %v867, %v865
        %v896 = vpack.c.b16 %v868, %v866
        %v897 = vpack.c.b16 %v871, %v869
        %v898 = vpack.c.b16 %v872, %v870
        %v899 = vpack.c.b16 %v875, %v873
        %v900 = vpack.c.b16 %v876, %v874
        %v901 = vpack.c.b16 %v879, %v877
        %v902 = vpack.c.b16 %v880, %v878
        %v903 = vpack.c.b16 %v883, %v881
        %v904 = vpack.c.b16 %v884, %v882
        %v905 = vpack.c.b16 %v887, %v885
        %v906 = vpack.c.b16 %v888, %v886
        %v907 = vpack.c.b16 %v891, %v889
        %v908 = vpack.c.b16 %v892, %v890
        %925 = vmatprep.subr.bf16.mxu0 %v894
        %926 = vmatpush1.bf16.msra.mxu0 %v893
        %927 = vmatprep.subr.bf16.mxu0 %v896
        %928 = vmatpush1.bf16.msra.mxu0 %v895
        %929 = vmatprep.subr.bf16.mxu0 %v898
        %930 = vmatpush1.bf16.msra.mxu0 %v897
        %931 = vmatprep.subr.bf16.mxu0 %v900
        %932 = vmatpush1.bf16.msra.mxu0 %v899
        %933 = vmatprep.subr.bf16.mxu0 %v902
        %934 = vmatpush1.bf16.msra.mxu0 %v901
        %935 = vmatprep.subr.bf16.mxu0 %v904
        %936 = vmatpush1.bf16.msra.mxu0 %v903
        %937 = vmatprep.subr.bf16.mxu0 %v906
        %938 = vmatpush1.bf16.msra.mxu0 %v905
        %939 = vmatprep.subr.bf16.mxu0 %v908
        %940 = vmatpush1.bf16.msra.mxu0 %v907
        %941 = vmatprep.subr.bf16.mxu0 0
        %942 = vmatpush1.bf16.msra.mxu0 0
        %943 = vmatprep.subr.bf16.mxu0 0
        %944 = vmatpush1.bf16.msra.mxu0 0
        %945 = vmatprep.subr.bf16.mxu0 0
        %946 = vmatpush1.bf16.msra.mxu0 0
        %947 = vmatprep.subr.bf16.mxu0 0
        %948 = vmatpush1.bf16.msra.mxu0 0
        %949 = vmatprep.subr.bf16.mxu0 0
        %950 = vmatpush1.bf16.msra.mxu0 0
        %951 = vmatprep.subr.bf16.mxu0 0
        %952 = vmatpush1.bf16.msra.mxu0 0
        %953 = vmatprep.subr.bf16.mxu0 0
        %954 = vmatpush1.bf16.msra.mxu0 0
        %955 = vmatprep.subr.bf16.mxu0 0
        %956 = vmatpush1.bf16.msra.mxu0 0
        %957 = vmatprep.mubr.bf16.mxu0 0
        %958 = vmatmul.mubr.bf16.gmra.mrb[0].mxu0 %v829
        %v959 = vpop.f32.mrb[0].mxu0
        %v960 = vadd.f32 0.0, %v959
        %v961 = vpop.f32.mrb[0].mxu0
        %v962 = vadd.f32 0.0, %v961
        %v963 = vpop.f32.mrb[0].mxu0
        %v964 = vadd.f32 0.0, %v963
        %v965 = vpop.f32.mrb[0].mxu0
        %v966 = vadd.f32 0.0, %v965
        %967 = vmatprep.mubr.bf16.mxu0 0
        %968 = vmatmul.mubr.bf16.gmra.mrb[0].mxu0 %v830
        %v969 = vpop.f32.mrb[0].mxu0
        %v970 = vadd.f32 0.0, %v969
        %v971 = vpop.f32.mrb[0].mxu0
        %v972 = vadd.f32 0.0, %v971
        %v973 = vpop.f32.mrb[0].mxu0
        %v974 = vadd.f32 0.0, %v973
        %v975 = vpop.f32.mrb[0].mxu0
        %v976 = vadd.f32 0.0, %v975
        %977 = vmatprep.mubr.bf16.mxu0 0
        %978 = vmatmul.mubr.bf16.gmra.mrb[0].mxu0 %v831
        %v979 = vpop.f32.mrb[0].mxu0
        %v980 = vadd.f32 0.0, %v979
        %v981 = vpop.f32.mrb[0].mxu0
        %v982 = vadd.f32 0.0, %v981
        %v983 = vpop.f32.mrb[0].mxu0
        %v984 = vadd.f32 0.0, %v983
        %v985 = vpop.f32.mrb[0].mxu0
        %v986 = vadd.f32 0.0, %v985
        %987 = vmatprep.mubr.bf16.mxu0 0
        %988 = vmatmul.mubr.bf16.gmra.mrb[0].mxu0 %v832
        %v989 = vpop.f32.mrb[0].mxu0
        %v990 = vadd.f32 0.0, %v989
        %v991 = vpop.f32.mrb[0].mxu0
        %v992 = vadd.f32 0.0, %v991
        %v993 = vpop.f32.mrb[0].mxu0
        %v994 = vadd.f32 0.0, %v993
        %v995 = vpop.f32.mrb[0].mxu0
        %v996 = vadd.f32 0.0, %v995
        %997 = vmatprep.mubr.bf16.mxu0 0
        %998 = vmatmul.mubr.bf16.gmra.mrb[0].mxu0 %v833
        %v999 = vpop.f32.mrb[0].mxu0
        %v1000 = vadd.f32 0.0, %v999
        %v1001 = vpop.f32.mrb[0].mxu0
        %v1002 = vadd.f32 0.0, %v1001
        %v1003 = vpop.f32.mrb[0].mxu0
        %v1004 = vadd.f32 0.0, %v1003
        %v1005 = vpop.f32.mrb[0].mxu0
        %v1006 = vadd.f32 0.0, %v1005
        %1007 = vmatprep.mubr.bf16.mxu0 0
        %1008 = vmatmul.mubr.bf16.gmra.mrb[0].mxu0 %v834
        %v1009 = vpop.f32.mrb[0].mxu0
        %v1010 = vadd.f32 0.0, %v1009
        %v1011 = vpop.f32.mrb[0].mxu0
        %v1012 = vadd.f32 0.0, %v1011
        %v1013 = vpop.f32.mrb[0].mxu0
        %v1014 = vadd.f32 0.0, %v1013
        %v1015 = vpop.f32.mrb[0].mxu0
        %v1016 = vadd.f32 0.0, %v1015
        %1017 = vmatprep.mubr.bf16.mxu0 0
        %1018 = vmatmul.mubr.bf16.gmra.mrb[0].mxu0 %v835
        %v1019 = vpop.f32.mrb[0].mxu0
        %v1020 = vadd.f32 0.0, %v1019
        %v1021 = vpop.f32.mrb[0].mxu0
        %v1022 = vadd.f32 0.0, %v1021
        %v1023 = vpop.f32.mrb[0].mxu0
        %v1024 = vadd.f32 0.0, %v1023
        %v1025 = vpop.f32.mrb[0].mxu0
        %v1026 = vadd.f32 0.0, %v1025
        %1027 = vmatprep.mubr.bf16.mxu0 0
        %1028 = vmatmul.mubr.bf16.gmra.mrb[0].mxu0 %v836
        %v1029 = vpop.f32.mrb[0].mxu0
        %v1030 = vadd.f32 0.0, %v1029
        %v1031 = vpop.f32.mrb[0].mxu0
        %v1032 = vadd.f32 0.0, %v1031
        %v1033 = vpop.f32.mrb[0].mxu0
        %v1034 = vadd.f32 0.0, %v1033
        %v1035 = vpop.f32.mrb[0].mxu0
        %v1036 = vadd.f32 0.0, %v1035
        %1037 = vdwg.mxu0
        %v1038 = vadd.f32 %v702, %v960
        %v1039 = vadd.f32 %v704, %v962
        %v1040 = vadd.f32 %v706, %v964
        %v1041 = vadd.f32 %v708, %v966
        %v1042 = vadd.f32 %v712, %v970
        %v1043 = vadd.f32 %v714, %v972
        %v1044 = vadd.f32 %v716, %v974
        %v1045 = vadd.f32 %v718, %v976
        %v1046 = vadd.f32 %v722, %v980
        %v1047 = vadd.f32 %v724, %v982
        %v1048 = vadd.f32 %v726, %v984
        %v1049 = vadd.f32 %v728, %v986
        %v1050 = vadd.f32 %v732, %v990
        %v1051 = vadd.f32 %v734, %v992
        %v1052 = vadd.f32 %v736, %v994
        %v1053 = vadd.f32 %v738, %v996
        %v1054 = vadd.f32 %v742, %v1000
        %v1055 = vadd.f32 %v744, %v1002
        %v1056 = vadd.f32 %v746, %v1004
        %v1057 = vadd.f32 %v748, %v1006
        %v1058 = vadd.f32 %v752, %v1010
        %v1059 = vadd.f32 %v754, %v1012
        %v1060 = vadd.f32 %v756, %v1014
        %v1061 = vadd.f32 %v758, %v1016
        %v1062 = vadd.f32 %v762, %v1020
        %v1063 = vadd.f32 %v764, %v1022
        %v1064 = vadd.f32 %v766, %v1024
        %v1065 = vadd.f32 %v768, %v1026
        %v1066 = vadd.f32 %v772, %v1030
        %v1067 = vadd.f32 %v774, %v1032
        %v1068 = vadd.f32 %v776, %v1034
        %v1069 = vadd.f32 %v778, %v1036
        %v1070 = vld [vmem:[%s2] sm:$0x3]
        %v1072 = vlaneseq
        %v1073 = vshrl.u32 %v1072, 7
        %v1074 = vsub.s32 0, %v1073
        %v1075 = vrot.slane %v1070, %v1074
        %v1076 = vlaneseq
        %v1077 = vshrl.u32 %v1076, 7
        %v1078 = vsub.s32 1, %v1077
        %v1079 = vrot.slane %v1070, %v1078
        %v1082 = vadd.f32 %v1038, %v1075
        %v1083 = vadd.f32 %v1039, %v1079
        %v1084 = vadd.f32 %v1040, %v1075
        %v1085 = vadd.f32 %v1041, %v1079
        %v1086 = vadd.f32 %v1042, %v1075
        %v1087 = vadd.f32 %v1043, %v1079
        %v1088 = vadd.f32 %v1044, %v1075
        %v1089 = vadd.f32 %v1045, %v1079
        %v1090 = vadd.f32 %v1046, %v1075
        %v1091 = vadd.f32 %v1047, %v1079
        %v1092 = vadd.f32 %v1048, %v1075
        %v1093 = vadd.f32 %v1049, %v1079
        %v1094 = vadd.f32 %v1050, %v1075
        %v1095 = vadd.f32 %v1051, %v1079
        %v1096 = vadd.f32 %v1052, %v1075
        %v1097 = vadd.f32 %v1053, %v1079
        %v1098 = vadd.f32 %v1054, %v1075
        %v1099 = vadd.f32 %v1055, %v1079
        %v1100 = vadd.f32 %v1056, %v1075
        %v1101 = vadd.f32 %v1057, %v1079
        %v1102 = vadd.f32 %v1058, %v1075
        %v1103 = vadd.f32 %v1059, %v1079
        %v1104 = vadd.f32 %v1060, %v1075
        %v1105 = vadd.f32 %v1061, %v1079
        %v1106 = vadd.f32 %v1062, %v1075
        %v1107 = vadd.f32 %v1063, %v1079
        %v1108 = vadd.f32 %v1064, %v1075
        %v1109 = vadd.f32 %v1065, %v1079
        %v1110 = vadd.f32 %v1066, %v1075
        %v1111 = vadd.f32 %v1067, %v1079
        %v1112 = vadd.f32 %v1068, %v1075
        %v1113 = vadd.f32 %v1069, %v1079
        %v1114 = vmax.f32 %v1082, 0.0
        %v1115 = vmax.f32 %v1083, 0.0
        %v1116 = vmax.f32 %v1084, 0.0
        %v1117 = vmax.f32 %v1085, 0.0
        %v1118 = vmax.f32 %v1086, 0.0
        %v1119 = vmax.f32 %v1087, 0.0
        %v1120 = vmax.f32 %v1088, 0.0
        %v1121 = vmax.f32 %v1089, 0.0
        %v1122 = vmax.f32 %v1090, 0.0
        %v1123 = vmax.f32 %v1091, 0.0
        %v1124 = vmax.f32 %v1092, 0.0
        %v1125 = vmax.f32 %v1093, 0.0
        %v1126 = vmax.f32 %v1094, 0.0
        %v1127 = vmax.f32 %v1095, 0.0
        %v1128 = vmax.f32 %v1096, 0.0
        %v1129 = vmax.f32 %v1097, 0.0
        %v1130 = vmax.f32 %v1098, 0.0
        %v1131 = vmax.f32 %v1099, 0.0
        %v1132 = vmax.f32 %v1100, 0.0
        %v1133 = vmax.f32 %v1101, 0.0
        %v1134 = vmax.f32 %v1102, 0.0
        %v1135 = vmax.f32 %v1103, 0.0
        %v1136 = vmax.f32 %v1104, 0.0
        %v1137 = vmax.f32 %v1105, 0.0
        %v1138 = vmax.f32 %v1106, 0.0
        %v1139 = vmax.f32 %v1107, 0.0
        %v1140 = vmax.f32 %v1108, 0.0
        %v1141 = vmax.f32 %v1109, 0.0
        %v1142 = vmax.f32 %v1110, 0.0
        %v1143 = vmax.f32 %v1111, 0.0
        %v1144 = vmax.f32 %v1112, 0.0
        %v1145 = vmax.f32 %v1113, 0.0
        %v1146 = vpack.c.bf16 %v1116, %v1114
        %v1147 = vpack.c.bf16 %v1117, %v1115
        %v1148 = vpack.c.bf16 %v1120, %v1118
        %v1149 = vpack.c.bf16 %v1121, %v1119
        %v1150 = vpack.c.bf16 %v1124, %v1122
        %v1151 = vpack.c.bf16 %v1125, %v1123
        %v1152 = vpack.c.bf16 %v1128, %v1126
        %v1153 = vpack.c.bf16 %v1129, %v1127
        %v1154 = vpack.c.bf16 %v1132, %v1130
        %v1155 = vpack.c.bf16 %v1133, %v1131
        %v1156 = vpack.c.bf16 %v1136, %v1134
        %v1157 = vpack.c.bf16 %v1137, %v1135
        %v1158 = vpack.c.bf16 %v1140, %v1138
        %v1159 = vpack.c.bf16 %v1141, %v1139
        %v1160 = vpack.c.bf16 %v1144, %v1142
        %v1161 = vpack.c.bf16 %v1145, %v1143
        %v1162 = vld [vmem:[#allocation7] sm:$0xff]
        %v1163 = vld [vmem:[#allocation7 + $0x8] sm:$0xff]
        %v1164 = vld [vmem:[#allocation7 + $0x10] sm:$0xff]
        %v1165 = vld [vmem:[#allocation7 + $0x18] sm:$0xff]
        %v1166 = vld [vmem:[#allocation7 + $0x20] sm:$0xff]
        %v1167 = vld [vmem:[#allocation7 + $0x28] sm:$0xff]
        %v1168 = vld [vmem:[#allocation7 + $0x30] sm:$0xff]
        %v1169 = vld [vmem:[#allocation7 + $0x38] sm:$0xff]
        %v1170 = vld [vmem:[#allocation7 + $0x40] sm:$0xff]
        %v1171 = vld [vmem:[#allocation7 + $0x48] sm:$0xff]
        %v1172 = vld [vmem:[#allocation7 + $0x50] sm:$0xff]
        %v1173 = vld [vmem:[#allocation7 + $0x58] sm:$0xff]
        %v1174 = vld [vmem:[#allocation7 + $0x60] sm:$0xff]
        %v1175 = vld [vmem:[#allocation7 + $0x68] sm:$0xff]
        %v1176 = vld [vmem:[#allocation7 + $0x70] sm:$0xff]
        %v1177 = vld [vmem:[#allocation7 + $0x78] sm:$0xff]
        %v1178 = vld [vmem:[#allocation7 + $0x80] sm:$0xff]
        %v1179 = vld [vmem:[#allocation7 + $0x88] sm:$0xff]
        %v1180 = vld [vmem:[#allocation7 + $0x90] sm:$0xff]
        %v1181 = vld [vmem:[#allocation7 + $0x98] sm:$0xff]
        %v1182 = vld [vmem:[#allocation7 + $0xa0] sm:$0xff]
        %v1183 = vld [vmem:[#allocation7 + $0xa8] sm:$0xff]
        %v1184 = vld [vmem:[#allocation7 + $0xb0] sm:$0xff]
        %v1185 = vld [vmem:[#allocation7 + $0xb8] sm:$0xff]
        %v1186 = vld [vmem:[#allocation7 + $0xc0] sm:$0xff]
        %v1187 = vld [vmem:[#allocation7 + $0xc8] sm:$0xff]
        %v1188 = vld [vmem:[#allocation7 + $0xd0] sm:$0xff]
        %v1189 = vld [vmem:[#allocation7 + $0xd8] sm:$0xff]
        %v1190 = vld [vmem:[#allocation7 + $0xe0] sm:$0xff]
        %v1191 = vld [vmem:[#allocation7 + $0xe8] sm:$0xff]
        %v1192 = vld [vmem:[#allocation7 + $0xf0] sm:$0xff]
        %v1193 = vld [vmem:[#allocation7 + $0xf8] sm:$0xff]
        %v1194 = vld [vmem:[%s4] sm:$0x3]
        %v1196 = vlaneseq
        %v1197 = vshrl.u32 %v1196, 7
        %v1198 = vsub.s32 0, %v1197
        %v1199 = vrot.slane %v1194, %v1198
        %v1200 = vlaneseq
        %v1201 = vshrl.u32 %v1200, 7
        %v1202 = vsub.s32 1, %v1201
        %v1203 = vrot.slane %v1194, %v1202
        %v1238 = vunpack.c.l.b16 %v1162
        %v1239 = vunpack.c.h.b16 %v1162
        %v1240 = vunpack.c.l.b16 %v1163
        %v1241 = vunpack.c.h.b16 %v1163
        %v1242 = vunpack.c.l.b16 %v1164
        %v1243 = vunpack.c.h.b16 %v1164
        %v1244 = vunpack.c.l.b16 %v1165
        %v1245 = vunpack.c.h.b16 %v1165
        %v1246 = vunpack.c.l.b16 %v1166
        %v1247 = vunpack.c.h.b16 %v1166
        %v1248 = vunpack.c.l.b16 %v1167
        %v1249 = vunpack.c.h.b16 %v1167
        %v1250 = vunpack.c.l.b16 %v1168
        %v1251 = vunpack.c.h.b16 %v1168
        %v1252 = vunpack.c.l.b16 %v1169
        %v1253 = vunpack.c.h.b16 %v1169
        %v1254 = vunpack.c.l.b16 %v1170
        %v1255 = vunpack.c.h.b16 %v1170
        %v1256 = vunpack.c.l.b16 %v1171
        %v1257 = vunpack.c.h.b16 %v1171
        %v1258 = vunpack.c.l.b16 %v1172
        %v1259 = vunpack.c.h.b16 %v1172
        %v1260 = vunpack.c.l.b16 %v1173
        %v1261 = vunpack.c.h.b16 %v1173
        %v1262 = vunpack.c.l.b16 %v1174
        %v1263 = vunpack.c.h.b16 %v1174
        %v1264 = vunpack.c.l.b16 %v1175
        %v1265 = vunpack.c.h.b16 %v1175
        %v1266 = vunpack.c.l.b16 %v1176
        %v1267 = vunpack.c.h.b16 %v1176
        %v1268 = vunpack.c.l.b16 %v1177
        %v1269 = vunpack.c.h.b16 %v1177
        %v1270 = vunpack.c.l.b16 %v1178
        %v1271 = vunpack.c.h.b16 %v1178
        %v1272 = vunpack.c.l.b16 %v1179
        %v1273 = vunpack.c.h.b16 %v1179
        %v1274 = vunpack.c.l.b16 %v1180
        %v1275 = vunpack.c.h.b16 %v1180
        %v1276 = vunpack.c.l.b16 %v1181
        %v1277 = vunpack.c.h.b16 %v1181
        %v1278 = vunpack.c.l.b16 %v1182
        %v1279 = vunpack.c.h.b16 %v1182
        %v1280 = vunpack.c.l.b16 %v1183
        %v1281 = vunpack.c.h.b16 %v1183
        %v1282 = vunpack.c.l.b16 %v1184
        %v1283 = vunpack.c.h.b16 %v1184
        %v1284 = vunpack.c.l.b16 %v1185
        %v1285 = vunpack.c.h.b16 %v1185
        %v1286 = vunpack.c.l.b16 %v1186
        %v1287 = vunpack.c.h.b16 %v1186
        %v1288 = vunpack.c.l.b16 %v1187
        %v1289 = vunpack.c.h.b16 %v1187
        %v1290 = vunpack.c.l.b16 %v1188
        %v1291 = vunpack.c.h.b16 %v1188
        %v1292 = vunpack.c.l.b16 %v1189
        %v1293 = vunpack.c.h.b16 %v1189
        %v1294 = vunpack.c.l.b16 %v1190
        %v1295 = vunpack.c.h.b16 %v1190
        %v1296 = vunpack.c.l.b16 %v1191
        %v1297 = vunpack.c.h.b16 %v1191
        %v1298 = vunpack.c.l.b16 %v1192
        %v1299 = vunpack.c.h.b16 %v1192
        %v1300 = vunpack.c.l.b16 %v1193
        %v1301 = vunpack.c.h.b16 %v1193
        %v1302 = vpack.c.b16 %v1240, %v1238
        %v1303 = vpack.c.b16 %v1241, %v1239
        %v1304 = vpack.c.b16 %v1244, %v1242
        %v1305 = vpack.c.b16 %v1245, %v1243
        %v1306 = vpack.c.b16 %v1248, %v1246
        %v1307 = vpack.c.b16 %v1249, %v1247
        %v1308 = vpack.c.b16 %v1252, %v1250
        %v1309 = vpack.c.b16 %v1253, %v1251
        %v1310 = vpack.c.b16 %v1256, %v1254
        %v1311 = vpack.c.b16 %v1257, %v1255
        %v1312 = vpack.c.b16 %v1260, %v1258
        %v1313 = vpack.c.b16 %v1261, %v1259
        %v1314 = vpack.c.b16 %v1264, %v1262
        %v1315 = vpack.c.b16 %v1265, %v1263
        %v1316 = vpack.c.b16 %v1268, %v1266
        %v1317 = vpack.c.b16 %v1269, %v1267
        %v1318 = vpack.c.b16 %v1272, %v1270
        %v1319 = vpack.c.b16 %v1273, %v1271
        %v1320 = vpack.c.b16 %v1276, %v1274
        %v1321 = vpack.c.b16 %v1277, %v1275
        %v1322 = vpack.c.b16 %v1280, %v1278
        %v1323 = vpack.c.b16 %v1281, %v1279
        %v1324 = vpack.c.b16 %v1284, %v1282
        %v1325 = vpack.c.b16 %v1285, %v1283
        %v1326 = vpack.c.b16 %v1288, %v1286
        %v1327 = vpack.c.b16 %v1289, %v1287
        %v1328 = vpack.c.b16 %v1292, %v1290
        %v1329 = vpack.c.b16 %v1293, %v1291
        %v1330 = vpack.c.b16 %v1296, %v1294
        %v1331 = vpack.c.b16 %v1297, %v1295
        %v1332 = vpack.c.b16 %v1300, %v1298
        %v1333 = vpack.c.b16 %v1301, %v1299
        %1366 = vmatprep.subr.bf16.mxu0 %v1303
        %1367 = vmatpush1.bf16.msra.mxu0 %v1302
        %1368 = vmatprep.subr.bf16.mxu0 %v1305
        %1369 = vmatpush1.bf16.msra.mxu0 %v1304
        %1370 = vmatprep.subr.bf16.mxu0 %v1307
        %1371 = vmatpush1.bf16.msra.mxu0 %v1306
        %1372 = vmatprep.subr.bf16.mxu0 %v1309
        %1373 = vmatpush1.bf16.msra.mxu0 %v1308
        %1374 = vmatprep.subr.bf16.mxu0 %v1311
        %1375 = vmatpush1.bf16.msra.mxu0 %v1310
        %1376 = vmatprep.subr.bf16.mxu0 %v1313
        %1377 = vmatpush1.bf16.msra.mxu0 %v1312
        %1378 = vmatprep.subr.bf16.mxu0 %v1315
        %1379 = vmatpush1.bf16.msra.mxu0 %v1314
        %1380 = vmatprep.subr.bf16.mxu0 %v1317
        %1381 = vmatpush1.bf16.msra.mxu0 %v1316
        %1382 = vmatprep.subr.bf16.mxu0 %v1319
        %1383 = vmatpush1.bf16.msra.mxu0 %v1318
        %1384 = vmatprep.subr.bf16.mxu0 %v1321
        %1385 = vmatpush1.bf16.msra.mxu0 %v1320
        %1386 = vmatprep.subr.bf16.mxu0 %v1323
        %1387 = vmatpush1.bf16.msra.mxu0 %v1322
        %1388 = vmatprep.subr.bf16.mxu0 %v1325
        %1389 = vmatpush1.bf16.msra.mxu0 %v1324
        %1390 = vmatprep.subr.bf16.mxu0 %v1327
        %1391 = vmatpush1.bf16.msra.mxu0 %v1326
        %1392 = vmatprep.subr.bf16.mxu0 %v1329
        %1393 = vmatpush1.bf16.msra.mxu0 %v1328
        %1394 = vmatprep.subr.bf16.mxu0 %v1331
        %1395 = vmatpush1.bf16.msra.mxu0 %v1330
        %1396 = vmatprep.subr.bf16.mxu0 %v1333
        %1397 = vmatpush1.bf16.msra.mxu0 %v1332
        %1398 = vmatprep.mubr.bf16.mxu0 %v1147
        %1399 = vmatmul.mubr.bf16.gmra.mrb[0].mxu0 %v1146
        %v1400 = vpop.f32.mrb[0].mxu0
        %v1401 = vadd.f32 %v1199, %v1400
        %v1402 = vpop.f32.mrb[0].mxu0
        %v1403 = vadd.f32 %v1203, %v1402
        %v1404 = vpop.f32.mrb[0].mxu0
        %v1405 = vadd.f32 %v1199, %v1404
        %v1406 = vpop.f32.mrb[0].mxu0
        %v1407 = vadd.f32 %v1203, %v1406
        %1408 = vmatprep.mubr.bf16.mxu0 %v1149
        %1409 = vmatmul.mubr.bf16.gmra.mrb[0].mxu0 %v1148
        %v1410 = vpop.f32.mrb[0].mxu0
        %v1411 = vadd.f32 %v1199, %v1410
        %v1412 = vpop.f32.mrb[0].mxu0
        %v1413 = vadd.f32 %v1203, %v1412
        %v1414 = vpop.f32.mrb[0].mxu0
        %v1415 = vadd.f32 %v1199, %v1414
        %v1416 = vpop.f32.mrb[0].mxu0
        %v1417 = vadd.f32 %v1203, %v1416
        %1418 = vmatprep.mubr.bf16.mxu0 %v1151
        %1419 = vmatmul.mubr.bf16.gmra.mrb[0].mxu0 %v1150
        %v1420 = vpop.f32.mrb[0].mxu0
        %v1421 = vadd.f32 %v1199, %v1420
        %v1422 = vpop.f32.mrb[0].mxu0
        %v1423 = vadd.f32 %v1203, %v1422
        %v1424 = vpop.f32.mrb[0].mxu0
        %v1425 = vadd.f32 %v1199, %v1424
        %v1426 = vpop.f32.mrb[0].mxu0
        %v1427 = vadd.f32 %v1203, %v1426
        %1428 = vmatprep.mubr.bf16.mxu0 %v1153
        %1429 = vmatmul.mubr.bf16.gmra.mrb[0].mxu0 %v1152
        %v1430 = vpop.f32.mrb[0].mxu0
        %v1431 = vadd.f32 %v1199, %v1430
        %v1432 = vpop.f32.mrb[0].mxu0
        %v1433 = vadd.f32 %v1203, %v1432
        %v1434 = vpop.f32.mrb[0].mxu0
        %v1435 = vadd.f32 %v1199, %v1434
        %v1436 = vpop.f32.mrb[0].mxu0
        %v1437 = vadd.f32 %v1203, %v1436
        %1438 = vmatprep.mubr.bf16.mxu0 %v1155
        %1439 = vmatmul.mubr.bf16.gmra.mrb[0].mxu0 %v1154
        %v1440 = vpop.f32.mrb[0].mxu0
        %v1441 = vadd.f32 %v1199, %v1440
        %v1442 = vpop.f32.mrb[0].mxu0
        %v1443 = vadd.f32 %v1203, %v1442
        %v1444 = vpop.f32.mrb[0].mxu0
        %v1445 = vadd.f32 %v1199, %v1444
        %v1446 = vpop.f32.mrb[0].mxu0
        %v1447 = vadd.f32 %v1203, %v1446
        %1448 = vmatprep.mubr.bf16.mxu0 %v1157
        %1449 = vmatmul.mubr.bf16.gmra.mrb[0].mxu0 %v1156
        %v1450 = vpop.f32.mrb[0].mxu0
        %v1451 = vadd.f32 %v1199, %v1450
        %v1452 = vpop.f32.mrb[0].mxu0
        %v1453 = vadd.f32 %v1203, %v1452
        %v1454 = vpop.f32.mrb[0].mxu0
        %v1455 = vadd.f32 %v1199, %v1454
        %v1456 = vpop.f32.mrb[0].mxu0
        %v1457 = vadd.f32 %v1203, %v1456
        %1458 = vmatprep.mubr.bf16.mxu0 %v1159
        %1459 = vmatmul.mubr.bf16.gmra.mrb[0].mxu0 %v1158
        %v1460 = vpop.f32.mrb[0].mxu0
        %v1461 = vadd.f32 %v1199, %v1460
        %v1462 = vpop.f32.mrb[0].mxu0
        %v1463 = vadd.f32 %v1203, %v1462
        %v1464 = vpop.f32.mrb[0].mxu0
        %v1465 = vadd.f32 %v1199, %v1464
        %v1466 = vpop.f32.mrb[0].mxu0
        %v1467 = vadd.f32 %v1203, %v1466
        %1468 = vmatprep.mubr.bf16.mxu0 %v1161
        %1469 = vmatmul.mubr.bf16.gmra.mrb[0].mxu0 %v1160
        %v1470 = vpop.f32.mrb[0].mxu0
        %v1471 = vadd.f32 %v1199, %v1470
        %v1472 = vpop.f32.mrb[0].mxu0
        %v1473 = vadd.f32 %v1203, %v1472
        %v1474 = vpop.f32.mrb[0].mxu0
        %v1475 = vadd.f32 %v1199, %v1474
        %v1476 = vpop.f32.mrb[0].mxu0
        %v1477 = vadd.f32 %v1203, %v1476
        %1478 = vdwg.mxu0
        %1479 = vst [vmem:[%s271] sm:$0xff] %v1401
        %1480 = vst [vmem:[%s271 + $0x8] sm:$0xff] %v1403
        %1481 = vst [vmem:[%s271 + $0x10] sm:$0xff] %v1405
        %1482 = vst [vmem:[%s271 + $0x18] sm:$0xff] %v1407
        %1483 = vst [vmem:[%s271 + $0x20] sm:$0xff] %v1411
        %1484 = vst [vmem:[%s271 + $0x28] sm:$0xff] %v1413
        %1485 = vst [vmem:[%s271 + $0x30] sm:$0xff] %v1415
        %1486 = vst [vmem:[%s271 + $0x38] sm:$0xff] %v1417
        %1487 = vst [vmem:[%s271 + $0x40] sm:$0xff] %v1421
        %1488 = vst [vmem:[%s271 + $0x48] sm:$0xff] %v1423
        %1489 = vst [vmem:[%s271 + $0x50] sm:$0xff] %v1425
        %1490 = vst [vmem:[%s271 + $0x58] sm:$0xff] %v1427
        %1491 = vst [vmem:[%s271 + $0x60] sm:$0xff] %v1431
        %1492 = vst [vmem:[%s271 + $0x68] sm:$0xff] %v1433
        %1493 = vst [vmem:[%s271 + $0x70] sm:$0xff] %v1435
        %1494 = vst [vmem:[%s271 + $0x78] sm:$0xff] %v1437
        %1495 = vst [vmem:[%s271 + $0x80] sm:$0xff] %v1441
        %1496 = vst [vmem:[%s271 + $0x88] sm:$0xff] %v1443
        %1497 = vst [vmem:[%s271 + $0x90] sm:$0xff] %v1445
        %1498 = vst [vmem:[%s271 + $0x98] sm:$0xff] %v1447
        %1499 = vst [vmem:[%s271 + $0xa0] sm:$0xff] %v1451
        %1500 = vst [vmem:[%s271 + $0xa8] sm:$0xff] %v1453
        %1501 = vst [vmem:[%s271 + $0xb0] sm:$0xff] %v1455
        %1502 = vst [vmem:[%s271 + $0xb8] sm:$0xff] %v1457
        %1503 = vst [vmem:[%s271 + $0xc0] sm:$0xff] %v1461
        %1504 = vst [vmem:[%s271 + $0xc8] sm:$0xff] %v1463
        %1505 = vst [vmem:[%s271 + $0xd0] sm:$0xff] %v1465
        %1506 = vst [vmem:[%s271 + $0xd8] sm:$0xff] %v1467
        %1507 = vst [vmem:[%s271 + $0xe0] sm:$0xff] %v1471
        %1508 = vst [vmem:[%s271 + $0xe8] sm:$0xff] %v1473
        %1509 = vst [vmem:[%s271 + $0xf0] sm:$0xff] %v1475
        %1510 = vst [vmem:[%s271 + $0xf8] sm:$0xff] %v1477
        %s1511 = sand.u32 %s141, 1
        %s1512 = scalar_lea.sflag [#allocation4], %s1511
        %s1513 = sand.u32 %s141, 1
        %s1514 = smul.addr %s1513, 256
        %s1515 = scalar_lea.vmem [#allocation8], %s1514
        // Predicated region
        $region53: #{tpu_custom_call.1} parent=39 // pred_check
          %p1516 = pneg %p151
        $region54: #{tpu_custom_call.1} parent=39 // pred_check_branch
          %1518 = sbr.rel (%p1516) target = $region56
        $region55: #{tpu_custom_call.1} parent=39 // pred_region
          %s1520 = ssub.s32 4096, 4096
          %1521 = vsyncadd %s1512, %s1520
          %s1522 = smul.addr %s23, 32
          %s1523 = smul.addr %s1522, 128
          %s1524 = scalar_lea.hbm %s5, %s1523
          %s1525 = sshll.u32 %s1515, 4
          %s1526 = int_to_ptr.vmem [resolvable:$true] %s1525
          %1531 = dma.vmem_to_hbm [thread:$0]  %s1526, 4096, %s1524, %s1512, 256, 256, 16
        $region56: #{tpu_custom_call.1} parent=39 // pred_fallthru
          _
      $region40: #{tpu_custom_call.1} parent=5 // pred_fallthru
        _
      %p1532 = scmp.le.s32.totalorder 2, %s18
      // Predicated region
      $region57: #{tpu_custom_call.1} parent=5 // pred_check
        %p1533 = pneg %p1532
      $region58: #{tpu_custom_call.1} parent=5 // pred_check_branch
        %1535 = sbr.rel (%p1533) target = $region60
      $region59: #{tpu_custom_call.1} parent=5 // pred_region
        %s1536 = ssub.s32 %s18, 2
        // Predicated region
        $region61: #{tpu_custom_call.1} parent=59 // pred_check
          %p1537 = pneg %p157
        $region62: #{tpu_custom_call.1} parent=59 // pred_check_branch
          %1539 = sbr.rel (%p1537) target = $region64
        $region63: #{tpu_custom_call.1} parent=59 // pred_region
          %s1540 = sand.u32 %s142, 1
          %s1541 = scalar_lea.sflag [#allocation4], %s1540
          %s1542 = sand.u32 %s142, 1
          %s1543 = smul.addr %s1542, 256
          %s1544 = scalar_lea.vmem [#allocation8], %s1543
          %1545 = dma.done %s1541, 4096
        $region64: #{tpu_custom_call.1} parent=59 // pred_fallthru
          _
      $region60: #{tpu_custom_call.1} parent=5 // pred_fallthru
        _
    $region6: #{tpu_custom_call.1} parent=1 // loop_footer
      %s22 = sadd.s32 1, %s18
    $region7: #{tpu_custom_call.1} parent=1 // loop_footer_branch
      %17 = sbr.rel target = $region3
    $region8: #{tpu_custom_call.1} parent=1 // loop_exit
      _
    %1546 = vsyncpa [#allocation3], 1
    %s1547 = scalar_lea.sflag [#allocation3], 1
    %1548 = vsyncpa %s1547, 1
    %1549 = vsyncpa [#allocation6], 1
    %1550 = vsyncpa [#allocation4], 1
    %s1551 = scalar_lea.sflag [#allocation4], 1
    %1552 = vsyncpa %s1551, 1

</llo_original>
